<compile_context>
chip_gen: v6e
topology: v6e:2x2x1
jax: 0.10.0
libtpu: 0.0.40
codegen_flags: <defaults>
</compile_context>

<pallas_src>
import jax
import jax.numpy as jnp
from jax.experimental import pallas as pl
from jax.experimental.pallas import tpu as pltpu

# ---------------- problem sizes (small, consistent with the module) ---------
B = 2            # batch
C = 4            # image channels
H = W = 16       # spatial
S = 8            # transformer sequence length
FEAT = 32        # feature_dim
K = 4            # args.anchors (cluster / output dim)
EMB = 32         # args.embedding (anchor_centers dim, unused in forward)

HW = H * W                    # 256
BHW = B * HW                  # 512
BS = B * S                    # 16
OUT_LANES = 128               # lane-dense packed output width

# ---- packed weight-slab layout (8-row aligned regions, 128 lanes wide) -----
ROW_W3C = 0                        # [C, FEAT]         conv-stem weight
ROW_W4P = 8                        # [4*FEAT, FEAT]    transformer projection
ROW_WHEAD = ROW_W4P + 4 * FEAT     # [2*FEAT, 2*FEAT]  block-diag head weight
ROW_WOUT = ROW_WHEAD + 2 * FEAT    # [2*FEAT, 2*K]     block-diag output weight
WSLAB_ROWS = ROW_WOUT + 2 * FEAT   # 264 rows
WSLAB_LANES = 128


def _softmax_last(z):
    z = z - jnp.max(z, axis=-1, keepdims=True)
    e = jnp.exp(z)
    return e / jnp.sum(e, axis=-1, keepdims=True)


def emvcc_kernel(x_ref, pot_ref, pool3_ref, pool4_ref, w_ref, out_ref):
    f32 = jnp.float32

    # ----- encoder3 conv stem: [BHW,C] x [C,FEAT] as C=4 VPU broadcast FMAs.
    # TODO(synk): full ResNet50 backbone is an external module not shown in the
    # snippet; a conv-stem stand-in with the same output interface is used.
    x2 = x_ref[...]                                      # [BHW, C]
    w3c = w_ref[ROW_W3C:ROW_W3C + 8, 0:FEAT]             # [8, FEAT] (rows C..7 zero)
    h3 = x2[:, 0:1] * w3c[0:1, :]
    for c in range(1, C):
        h3 = h3 + x2[:, c:c + 1] * w3c[c:c + 1, :]
    h3 = jnp.maximum(h3, 0.0)                            # [BHW, FEAT]

    # ----- encoder4 projection: [BS, 4F] @ [4F, F] on the MXU.
    # TODO(synk): the 6-layer transformer encoder is an external module; a
    # single-projection stand-in with the same output interface is used.
    w4p = w_ref[ROW_W4P:ROW_W4P + 4 * FEAT, 0:FEAT]      # [4F, F]
    h4 = jnp.maximum(
        jnp.dot(pot_ref[...], w4p, preferred_element_type=f32), 0.0)  # [BS, F]

    # ----- global average pools as matmuls (no reshapes, no xlane reductions)
    g3 = jnp.dot(pool3_ref[...], h3, preferred_element_type=f32)      # [B, F]
    g4 = jnp.dot(pool4_ref[...], h4, preferred_element_type=f32)      # [B, F]

    # ----- fused heads: one block-diagonal head dot + one block-diag out dot
    g_cat = jnp.concatenate([g3, g4], axis=-1)                        # [B, 2F]
    w_head = w_ref[ROW_WHEAD:ROW_WHEAD + 2 * FEAT, 0:2 * FEAT]        # [2F, 2F]
    feat_cat = jnp.tanh(
        jnp.dot(g_cat, w_head, preferred_element_type=f32))           # [B, 2F]
    w_out = w_ref[ROW_WOUT:ROW_WOUT + 2 * FEAT, 0:2 * K]              # [2F, 2K]
    logits_cat = jnp.dot(feat_cat, w_out, preferred_element_type=f32)  # [B, 2K]

    # ----- EMVCC fusion (exact semantics of the PyTorch forward)
    feat_b = (feat_cat[:, :FEAT] + feat_cat[:, FEAT:]) * 50.0   # (f3+f4)*100/2
    out3 = _softmax_last(logits_cat[:, :K])
    out4 = _softmax_last(logits_cat[:, K:])
    out_b = (out3 + out4) * 0.5                                 # (o3+o4)/2

    # ----- single lane-dense 128-wide packed store (one unmasked-lane DMA)
    pad = jnp.zeros((feat_b.shape[0], OUT_LANES - FEAT - K), f32)
    out_ref[...] = jnp.concatenate([feat_b, out_b, pad], axis=-1)


def _pack_weights(params):
    """Pack all six weight matrices into one lane-dense [264, 128] f32 slab."""
    w3c, w3h, w3o = params["w3_conv"], params["w3_head"], params["w3_out"]
    w4p, w4h, w4o = params["w4_proj"], params["w4_head"], params["w4_out"]
    slab = jnp.zeros((WSLAB_ROWS, WSLAB_LANES), jnp.float32)
    slab = slab.at[ROW_W3C:ROW_W3C + C, 0:FEAT].set(w3c)
    slab = slab.at[ROW_W4P:ROW_W4P + 4 * FEAT, 0:FEAT].set(w4p)
    # block-diagonal head weight [[w3h, 0], [0, w4h]]
    slab = slab.at[ROW_WHEAD:ROW_WHEAD + FEAT, 0:FEAT].set(w3h)
    slab = slab.at[ROW_WHEAD + FEAT:ROW_WHEAD + 2 * FEAT, FEAT:2 * FEAT].set(w4h)
    # block-diagonal output weight [[w3o, 0], [0, w4o]]
    slab = slab.at[ROW_WOUT:ROW_WOUT + FEAT, 0:K].set(w3o)
    slab = slab.at[ROW_WOUT + FEAT:ROW_WOUT + 2 * FEAT, K:2 * K].set(w4o)
    return slab


def emvcc_forward(x_nchw, pot, params):
    """x_nchw: [B, C, H, W] f32, pot: [B, S, 4*FEAT] f32 -> (feat [B,F], out [B,K])."""
    b, c, h, w = x_nchw.shape
    # layout glue in plain JAX: NCHW -> flattened 2-D NHWC, pot -> 2-D
    x2 = jnp.transpose(x_nchw, (0, 2, 3, 1)).reshape(b * h * w, c)    # [BHW, C]
    pot2 = pot.reshape(b * S, 4 * FEAT)                               # [BS, 4F]

    # block-diagonal mean-pool matrices (fold the 1/N into the matrix)
    pool3 = jnp.kron(jnp.eye(b, dtype=jnp.float32),
                     jnp.ones((1, h * w), jnp.float32)) * (1.0 / (h * w))  # [B, BHW]
    pool4 = jnp.kron(jnp.eye(b, dtype=jnp.float32),
                     jnp.ones((1, S), jnp.float32)) * (1.0 / S)            # [B, BS]

    wslab = _pack_weights(params)

    vmem = pl.BlockSpec(memory_space=pltpu.MemorySpace.VMEM)
    packed = pl.pallas_call(
        emvcc_kernel,
        out_shape=jax.ShapeDtypeStruct((b, OUT_LANES), jnp.float32),
        in_specs=[vmem] * 5,
        out_specs=vmem,
    )(x2, pot2, pool3, pool4, wslab)

    feat_b = packed[:, :FEAT]
    out_b = packed[:, FEAT:FEAT + K]
    return feat_b, out_b


def _xavier_uniform(key, shape):
    fan_in, fan_out = shape[0], shape[1]
    bound = jnp.sqrt(6.0 / (fan_in + fan_out))
    return jax.random.uniform(key, shape, jnp.float32, -bound, bound)


def init_params(key):
    ks = jax.random.split(key, 8)
    return {
        # encoder3 (ResNet50 stand-in)
        "w3_conv": _xavier_uniform(ks[0], (C, FEAT)),
        "w3_head": _xavier_uniform(ks[1], (FEAT, FEAT)),
        "w3_out":  _xavier_uniform(ks[2], (FEAT, K)),
        # encoder4 (transformer stand-in)
        "w4_proj": _xavier_uniform(ks[3], (4 * FEAT, FEAT)),
        "w4_head": _xavier_uniform(ks[4], (FEAT, FEAT)),
        "w4_out":  _xavier_uniform(ks[5], (FEAT, K)),
        # parameters declared in EMVCC.__init__ but NOT used in forward:
        "weight": _xavier_uniform(ks[6], (128, 128)),
        "anchor_centers": jax.random.normal(ks[7], (K, EMB), jnp.float32),
    }


if __name__ == "__main__":
    key = jax.random.PRNGKey(0)
    k_x, k_pot, k_params = jax.random.split(key, 3)

    x = jax.random.normal(k_x, (B, C, H, W), jnp.float32)          # image view
    pot = jax.random.normal(k_pot, (B, S, 4 * FEAT), jnp.float32)  # second view
    params = init_params(k_params)

    forward = jax.jit(emvcc_forward)
    feat_b, out_b = forward(x, pot, params)
    jax.block_until_ready((feat_b, out_b))

    assert feat_b.shape == (B, FEAT) and out_b.shape == (B, K)
    assert bool(jnp.all(jnp.isfinite(feat_b))) and bool(jnp.all(jnp.isfinite(out_b)))
    print("KERNEL_OK")
</pallas_src>

<mosaic_0001>
module attributes {stable_mosaic.version = 11 : i64} {
  func.func @emvcc_kernel(%arg0: memref<512x4xf32, #tpu.memory_space<vmem>>, %arg1: memref<16x128xf32, #tpu.memory_space<vmem>>, %arg2: memref<2x512xf32, #tpu.memory_space<vmem>>, %arg3: memref<2x16xf32, #tpu.memory_space<vmem>>, %arg4: memref<264x128xf32, #tpu.memory_space<vmem>>, %arg5: memref<2x128xf32, #tpu.memory_space<vmem>>) attributes {dimension_semantics = [], scalar_prefetch = 0 : i64, scratch_operands = 0 : i64, tpu.core_type = #tpu.core_type<tc>} {
    %c0 = arith.constant 0 : index
    %c0_0 = arith.constant 0 : index
    %0 = vector.load %arg0[%c0, %c0_0] : memref<512x4xf32, #tpu.memory_space<vmem>>, vector<512x4xf32>
    %c0_1 = arith.constant 0 : index
    %c0_2 = arith.constant 0 : index
    %1 = vector.load %arg4[%c0_1, %c0_2] : memref<264x128xf32, #tpu.memory_space<vmem>>, vector<8x32xf32>
    %2 = vector.extract_strided_slice %0 {offsets = [0, 0], sizes = [512, 1], strides = [1, 1]} : vector<512x4xf32> to vector<512x1xf32>
    %3 = vector.extract_strided_slice %1 {offsets = [0, 0], sizes = [1, 32], strides = [1, 1]} : vector<8x32xf32> to vector<1x32xf32>
    %4 = vector.broadcast %2 : vector<512x1xf32> to vector<512x32xf32>
    %5 = vector.broadcast %3 : vector<1x32xf32> to vector<512x32xf32>
    %6 = arith.mulf %4, %5 : vector<512x32xf32>
    %7 = vector.extract_strided_slice %0 {offsets = [0, 1], sizes = [512, 1], strides = [1, 1]} : vector<512x4xf32> to vector<512x1xf32>
    %8 = vector.extract_strided_slice %1 {offsets = [1, 0], sizes = [1, 32], strides = [1, 1]} : vector<8x32xf32> to vector<1x32xf32>
    %9 = vector.broadcast %7 : vector<512x1xf32> to vector<512x32xf32>
    %10 = vector.broadcast %8 : vector<1x32xf32> to vector<512x32xf32>
    %11 = arith.mulf %9, %10 : vector<512x32xf32>
    %12 = arith.addf %6, %11 : vector<512x32xf32>
    %13 = vector.extract_strided_slice %0 {offsets = [0, 2], sizes = [512, 1], strides = [1, 1]} : vector<512x4xf32> to vector<512x1xf32>
    %14 = vector.extract_strided_slice %1 {offsets = [2, 0], sizes = [1, 32], strides = [1, 1]} : vector<8x32xf32> to vector<1x32xf32>
    %15 = vector.broadcast %13 : vector<512x1xf32> to vector<512x32xf32>
    %16 = vector.broadcast %14 : vector<1x32xf32> to vector<512x32xf32>
    %17 = arith.mulf %15, %16 : vector<512x32xf32>
    %18 = arith.addf %12, %17 : vector<512x32xf32>
    %19 = vector.extract_strided_slice %0 {offsets = [0, 3], sizes = [512, 1], strides = [1, 1]} : vector<512x4xf32> to vector<512x1xf32>
    %20 = vector.extract_strided_slice %1 {offsets = [3, 0], sizes = [1, 32], strides = [1, 1]} : vector<8x32xf32> to vector<1x32xf32>
    %21 = vector.broadcast %19 : vector<512x1xf32> to vector<512x32xf32>
    %22 = vector.broadcast %20 : vector<1x32xf32> to vector<512x32xf32>
    %23 = arith.mulf %21, %22 : vector<512x32xf32>
    %24 = arith.addf %18, %23 : vector<512x32xf32>
    %cst = arith.constant 0.000000e+00 : f32
    %25 = vector.broadcast %cst : f32 to vector<512x32xf32>
    %26 = arith.maximumf %24, %25 : vector<512x32xf32>
    %c8 = arith.constant 8 : index
    %c0_3 = arith.constant 0 : index
    %27 = vector.load %arg4[%c8, %c0_3] : memref<264x128xf32, #tpu.memory_space<vmem>>, vector<128x32xf32>
    %c0_4 = arith.constant 0 : index
    %c0_5 = arith.constant 0 : index
    %28 = vector.load %arg1[%c0_4, %c0_5] : memref<16x128xf32, #tpu.memory_space<vmem>>, vector<16x128xf32>
    %cst_6 = arith.constant dense<0.000000e+00> : vector<16x32xf32>
    %29 = tpu.matmul %28, %27, %cst_6 {dimension_numbers = #tpu.dot_dimension_numbers<[1], [0], [0], [1], [0, 0, 1, 1], [], []>} : vector<16x128xf32>, vector<128x32xf32>, vector<16x32xf32> -> vector<16x32xf32>
    %cst_7 = arith.constant 0.000000e+00 : f32
    %30 = vector.broadcast %cst_7 : f32 to vector<16x32xf32>
    %31 = arith.maximumf %29, %30 : vector<16x32xf32>
    %c0_8 = arith.constant 0 : index
    %c0_9 = arith.constant 0 : index
    %32 = vector.load %arg2[%c0_8, %c0_9] : memref<2x512xf32, #tpu.memory_space<vmem>>, vector<2x512xf32>
    %cst_10 = arith.constant dense<0.000000e+00> : vector<2x32xf32>
    %33 = tpu.matmul %32, %26, %cst_10 {dimension_numbers = #tpu.dot_dimension_numbers<[1], [0], [0], [1], [0, 0, 1, 1], [], []>} : vector<2x512xf32>, vector<512x32xf32>, vector<2x32xf32> -> vector<2x32xf32>
    %c0_11 = arith.constant 0 : index
    %c0_12 = arith.constant 0 : index
    %34 = vector.load %arg3[%c0_11, %c0_12] : memref<2x16xf32, #tpu.memory_space<vmem>>, vector<2x16xf32>
    %cst_13 = arith.constant dense<0.000000e+00> : vector<2x32xf32>
    %35 = tpu.matmul %34, %31, %cst_13 {dimension_numbers = #tpu.dot_dimension_numbers<[1], [0], [0], [1], [0, 0, 1, 1], [], []>} : vector<2x16xf32>, vector<16x32xf32>, vector<2x32xf32> -> vector<2x32xf32>
    %36 = tpu.concatenate %33, %35 in 1 : vector<2x32xf32>, vector<2x32xf32> -> vector<2x64xf32>
    %c136 = arith.constant 136 : index
    %c0_14 = arith.constant 0 : index
    %37 = vector.load %arg4[%c136, %c0_14] : memref<264x128xf32, #tpu.memory_space<vmem>>, vector<64x64xf32>
    %cst_15 = arith.constant dense<0.000000e+00> : vector<2x64xf32>
    %38 = tpu.matmul %36, %37, %cst_15 {dimension_numbers = #tpu.dot_dimension_numbers<[1], [0], [0], [1], [0, 0, 1, 1], [], []>} : vector<2x64xf32>, vector<64x64xf32>, vector<2x64xf32> -> vector<2x64xf32>
    %39 = math.tanh %38 : vector<2x64xf32>
    %c200 = arith.constant 200 : index
    %c0_16 = arith.constant 0 : index
    %40 = vector.load %arg4[%c200, %c0_16] : memref<264x128xf32, #tpu.memory_space<vmem>>, vector<64x8xf32>
    %cst_17 = arith.constant dense<0.000000e+00> : vector<2x8xf32>
    %41 = tpu.matmul %39, %40, %cst_17 {dimension_numbers = #tpu.dot_dimension_numbers<[1], [0], [0], [1], [0, 0, 1, 1], [], []>} : vector<2x64xf32>, vector<64x8xf32>, vector<2x8xf32> -> vector<2x8xf32>
    %42 = vector.extract_strided_slice %39 {offsets = [0, 0], sizes = [2, 32], strides = [1, 1]} : vector<2x64xf32> to vector<2x32xf32>
    %43 = vector.extract_strided_slice %39 {offsets = [0, 32], sizes = [2, 32], strides = [1, 1]} : vector<2x64xf32> to vector<2x32xf32>
    %44 = arith.addf %42, %43 : vector<2x32xf32>
    %cst_18 = arith.constant 5.000000e+01 : f32
    %45 = vector.broadcast %cst_18 : f32 to vector<2x32xf32>
    %46 = arith.mulf %44, %45 : vector<2x32xf32>
    %47 = vector.extract_strided_slice %41 {offsets = [0, 0], sizes = [2, 4], strides = [1, 1]} : vector<2x8xf32> to vector<2x4xf32>
    %cst_19 = arith.constant dense<0xFF800000> : vector<2xf32>
    %48 = vector.multi_reduction <maximumf>, %47, %cst_19 [1] : vector<2x4xf32> to vector<2xf32>
    %49 = vector.shape_cast %48 : vector<2xf32> to vector<2x1xf32>
    %50 = vector.broadcast %49 : vector<2x1xf32> to vector<2x4xf32>
    %51 = arith.subf %47, %50 : vector<2x4xf32>
    %52 = math.exp %51 : vector<2x4xf32>
    %cst_20 = arith.constant dense<0.000000e+00> : vector<2xf32>
    %53 = vector.multi_reduction <add>, %52, %cst_20 [1] : vector<2x4xf32> to vector<2xf32>
    %54 = vector.shape_cast %53 : vector<2xf32> to vector<2x1xf32>
    %55 = vector.broadcast %54 : vector<2x1xf32> to vector<2x4xf32>
    %56 = arith.divf %52, %55 : vector<2x4xf32>
    %57 = vector.extract_strided_slice %41 {offsets = [0, 4], sizes = [2, 4], strides = [1, 1]} : vector<2x8xf32> to vector<2x4xf32>
    %cst_21 = arith.constant dense<0xFF800000> : vector<2xf32>
    %58 = vector.multi_reduction <maximumf>, %57, %cst_21 [1] : vector<2x4xf32> to vector<2xf32>
    %59 = vector.shape_cast %58 : vector<2xf32> to vector<2x1xf32>
    %60 = vector.broadcast %59 : vector<2x1xf32> to vector<2x4xf32>
    %61 = arith.subf %57, %60 : vector<2x4xf32>
    %62 = math.exp %61 : vector<2x4xf32>
    %cst_22 = arith.constant dense<0.000000e+00> : vector<2xf32>
    %63 = vector.multi_reduction <add>, %62, %cst_22 [1] : vector<2x4xf32> to vector<2xf32>
    %64 = vector.shape_cast %63 : vector<2xf32> to vector<2x1xf32>
    %65 = vector.broadcast %64 : vector<2x1xf32> to vector<2x4xf32>
    %66 = arith.divf %62, %65 : vector<2x4xf32>
    %67 = arith.addf %56, %66 : vector<2x4xf32>
    %cst_23 = arith.constant 5.000000e-01 : f32
    %68 = vector.broadcast %cst_23 : f32 to vector<2x4xf32>
    %69 = arith.mulf %67, %68 : vector<2x4xf32>
    %cst_24 = arith.constant 0.000000e+00 : f32
    %70 = vector.broadcast %cst_24 : f32 to vector<2x92xf32>
    %71 = tpu.concatenate %46, %69, %70 in 1 : vector<2x32xf32>, vector<2x4xf32>, vector<2x92xf32> -> vector<2x128xf32>
    %c0_25 = arith.constant 0 : index
    %c0_26 = arith.constant 0 : index
    %72 = vector.load %arg5[%c0_25, %c0_26] : memref<2x128xf32, #tpu.memory_space<vmem>>, vector<2x128xf32>
    tpu.vector_store %arg5[%c0_25, %c0_26], %71 {strides = array<i32>} : memref<2x128xf32, #tpu.memory_space<vmem>>, vector<2x128xf32>,
    return
  }
}

</mosaic_0001>

<llo_original>
// kernel: emvcc_forward.1
$region0: #{emvcc_forward.1}
  #allocation0 [shape = 'u32[]', space=smem, size = 0x4, offset = 0x4, fixed_abs, tag = 'smem constant byte address 0x4 - core index']
  #allocation1 [shape = 'u32[144,128]{1,0:T(1,128)}', space=vmem, size = 0x12000, scoped, tag = 'internal scratch']
  %s0 = inlined_call_operand.vmem [shape: f32[512,4], index: 0, kind: input, shape index: {}]
  %s1 = inlined_call_operand.vmem [shape: f32[16,128], index: 1, kind: input, shape index: {}]
  %s2 = inlined_call_operand.vmem [shape: f32[2,512], index: 2, kind: input, shape index: {}]
  %s3 = inlined_call_operand.vmem [shape: f32[2,16], index: 3, kind: input, shape index: {}]
  %s4 = inlined_call_operand.vmem [shape: f32[264,128], index: 4, kind: input, shape index: {}]
  %s5 = inlined_call_operand.vmem [shape: f32[2,128], index: 5, kind: output, shape index: {}]
  %s6 = sld [smem:[#allocation0]]
  $region30: #{emvcc_forward.1} parent=0
    _
  %s8 = ssub.s32 1, %s6
  %s9 = scalar_select 0, %s8, %s6
  // Predicated region
  $region2: #{emvcc_forward.1} parent=0 // pred_check
    _
  $region3: #{emvcc_forward.1} parent=0 // pred_check_branch
    %11 = sbr.rel (0) target = $region5
  $region4: #{emvcc_forward.1} parent=0 // pred_region
    _
  $region5: #{emvcc_forward.1} parent=0 // pred_fallthru
    _
  // Predicated region
  $region6: #{emvcc_forward.1} parent=0 // pred_check
    _
  $region7: #{emvcc_forward.1} parent=0 // pred_check_branch
    %13 = sbr.rel (0) target = $region9
  $region8: #{emvcc_forward.1} parent=0 // pred_region
    _
  $region9: #{emvcc_forward.1} parent=0 // pred_fallthru
    _
  // Predicated region
  $region10: #{emvcc_forward.1} parent=0 // pred_check
    _
  $region11: #{emvcc_forward.1} parent=0 // pred_check_branch
    %15 = sbr.rel (0) target = $region13
  $region12: #{emvcc_forward.1} parent=0 // pred_region
    _
  $region13: #{emvcc_forward.1} parent=0 // pred_fallthru
    _
  // Predicated region
  $region14: #{emvcc_forward.1} parent=0 // pred_check
    _
  $region15: #{emvcc_forward.1} parent=0 // pred_check_branch
    %17 = sbr.rel (0) target = $region17
  $region16: #{emvcc_forward.1} parent=0 // pred_region
    _
  $region17: #{emvcc_forward.1} parent=0 // pred_fallthru
    _
  // Predicated region
  $region18: #{emvcc_forward.1} parent=0 // pred_check
    _
  $region19: #{emvcc_forward.1} parent=0 // pred_check_branch
    %19 = sbr.rel (0) target = $region21
  $region20: #{emvcc_forward.1} parent=0 // pred_region
    _
  $region21: #{emvcc_forward.1} parent=0 // pred_fallthru
    _
  %v20 = vld [vmem:[%s0] sm:$0xff]
  %v21 = vld [vmem:[%s0 + $0x8] sm:$0xff]
  %v22 = vld [vmem:[%s0 + $0x10] sm:$0xff]
  %v23 = vld [vmem:[%s0 + $0x18] sm:$0xff]
  %v24 = vld [vmem:[%s0 + $0x20] sm:$0xff]
  %v25 = vld [vmem:[%s0 + $0x28] sm:$0xff]
  %v26 = vld [vmem:[%s0 + $0x30] sm:$0xff]
  %v27 = vld [vmem:[%s0 + $0x38] sm:$0xff]
  %v28 = vld [vmem:[%s0 + $0x40] sm:$0xff]
  %v29 = vld [vmem:[%s0 + $0x48] sm:$0xff]
  %v30 = vld [vmem:[%s0 + $0x50] sm:$0xff]
  %v31 = vld [vmem:[%s0 + $0x58] sm:$0xff]
  %v32 = vld [vmem:[%s0 + $0x60] sm:$0xff]
  %v33 = vld [vmem:[%s0 + $0x68] sm:$0xff]
  %v34 = vld [vmem:[%s0 + $0x70] sm:$0xff]
  %v35 = vld [vmem:[%s0 + $0x78] sm:$0xff]
  %v36 = vld [vmem:[%s0 + $0x80] sm:$0xff]
  %v37 = vld [vmem:[%s0 + $0x88] sm:$0xff]
  %v38 = vld [vmem:[%s0 + $0x90] sm:$0xff]
  %v39 = vld [vmem:[%s0 + $0x98] sm:$0xff]
  %v40 = vld [vmem:[%s0 + $0xa0] sm:$0xff]
  %v41 = vld [vmem:[%s0 + $0xa8] sm:$0xff]
  %v42 = vld [vmem:[%s0 + $0xb0] sm:$0xff]
  %v43 = vld [vmem:[%s0 + $0xb8] sm:$0xff]
  %v44 = vld [vmem:[%s0 + $0xc0] sm:$0xff]
  %v45 = vld [vmem:[%s0 + $0xc8] sm:$0xff]
  %v46 = vld [vmem:[%s0 + $0xd0] sm:$0xff]
  %v47 = vld [vmem:[%s0 + $0xd8] sm:$0xff]
  %v48 = vld [vmem:[%s0 + $0xe0] sm:$0xff]
  %v49 = vld [vmem:[%s0 + $0xe8] sm:$0xff]
  %v50 = vld [vmem:[%s0 + $0xf0] sm:$0xff]
  %v51 = vld [vmem:[%s0 + $0xf8] sm:$0xff]
  %v52 = vld [vmem:[%s0 + $0x100] sm:$0xff]
  %v53 = vld [vmem:[%s0 + $0x108] sm:$0xff]
  %v54 = vld [vmem:[%s0 + $0x110] sm:$0xff]
  %v55 = vld [vmem:[%s0 + $0x118] sm:$0xff]
  %v56 = vld [vmem:[%s0 + $0x120] sm:$0xff]
  %v57 = vld [vmem:[%s0 + $0x128] sm:$0xff]
  %v58 = vld [vmem:[%s0 + $0x130] sm:$0xff]
  %v59 = vld [vmem:[%s0 + $0x138] sm:$0xff]
  %v60 = vld [vmem:[%s0 + $0x140] sm:$0xff]
  %v61 = vld [vmem:[%s0 + $0x148] sm:$0xff]
  %v62 = vld [vmem:[%s0 + $0x150] sm:$0xff]
  %v63 = vld [vmem:[%s0 + $0x158] sm:$0xff]
  %v64 = vld [vmem:[%s0 + $0x160] sm:$0xff]
  %v65 = vld [vmem:[%s0 + $0x168] sm:$0xff]
  %v66 = vld [vmem:[%s0 + $0x170] sm:$0xff]
  %v67 = vld [vmem:[%s0 + $0x178] sm:$0xff]
  %v68 = vld [vmem:[%s0 + $0x180] sm:$0xff]
  %v69 = vld [vmem:[%s0 + $0x188] sm:$0xff]
  %v70 = vld [vmem:[%s0 + $0x190] sm:$0xff]
  %v71 = vld [vmem:[%s0 + $0x198] sm:$0xff]
  %v72 = vld [vmem:[%s0 + $0x1a0] sm:$0xff]
  %v73 = vld [vmem:[%s0 + $0x1a8] sm:$0xff]
  %v74 = vld [vmem:[%s0 + $0x1b0] sm:$0xff]
  %v75 = vld [vmem:[%s0 + $0x1b8] sm:$0xff]
  %v76 = vld [vmem:[%s0 + $0x1c0] sm:$0xff]
  %v77 = vld [vmem:[%s0 + $0x1c8] sm:$0xff]
  %v78 = vld [vmem:[%s0 + $0x1d0] sm:$0xff]
  %v79 = vld [vmem:[%s0 + $0x1d8] sm:$0xff]
  %v80 = vld [vmem:[%s0 + $0x1e0] sm:$0xff]
  %v81 = vld [vmem:[%s0 + $0x1e8] sm:$0xff]
  %v82 = vld [vmem:[%s0 + $0x1f0] sm:$0xff]
  %v83 = vld [vmem:[%s0 + $0x1f8] sm:$0xff]
  %v84 = vld [vmem:[%s4] sm:$0xff]
  %86 = vset.pattern.permute.xlu0 0
  %87 = vperm.xlu0 %86, %v20
  %v88 = vpop.permute.xlu0 %87
  %91 = vset.pattern.permute.xlu0 0
  %92 = vperm.xlu0 %91, %v21
  %v93 = vpop.permute.xlu0 %92
  %96 = vset.pattern.permute.xlu0 0
  %97 = vperm.xlu0 %96, %v22
  %v98 = vpop.permute.xlu0 %97
  %101 = vset.pattern.permute.xlu0 0
  %102 = vperm.xlu0 %101, %v23
  %v103 = vpop.permute.xlu0 %102
  %106 = vset.pattern.permute.xlu0 0
  %107 = vperm.xlu0 %106, %v24
  %v108 = vpop.permute.xlu0 %107
  %111 = vset.pattern.permute.xlu0 0
  %112 = vperm.xlu0 %111, %v25
  %v113 = vpop.permute.xlu0 %112
  %116 = vset.pattern.permute.xlu0 0
  %117 = vperm.xlu0 %116, %v26
  %v118 = vpop.permute.xlu0 %117
  %121 = vset.pattern.permute.xlu0 0
  %122 = vperm.xlu0 %121, %v27
  %v123 = vpop.permute.xlu0 %122
  %126 = vset.pattern.permute.xlu0 0
  %127 = vperm.xlu0 %126, %v28
  %v128 = vpop.permute.xlu0 %127
  %131 = vset.pattern.permute.xlu0 0
  %132 = vperm.xlu0 %131, %v29
  %v133 = vpop.permute.xlu0 %132
  %136 = vset.pattern.permute.xlu0 0
  %137 = vperm.xlu0 %136, %v30
  %v138 = vpop.permute.xlu0 %137
  %141 = vset.pattern.permute.xlu0 0
  %142 = vperm.xlu0 %141, %v31
  %v143 = vpop.permute.xlu0 %142
  %146 = vset.pattern.permute.xlu0 0
  %147 = vperm.xlu0 %146, %v32
  %v148 = vpop.permute.xlu0 %147
  %151 = vset.pattern.permute.xlu0 0
  %152 = vperm.xlu0 %151, %v33
  %v153 = vpop.permute.xlu0 %152
  %156 = vset.pattern.permute.xlu0 0
  %157 = vperm.xlu0 %156, %v34
  %v158 = vpop.permute.xlu0 %157
  %161 = vset.pattern.permute.xlu0 0
  %162 = vperm.xlu0 %161, %v35
  %v163 = vpop.permute.xlu0 %162
  %166 = vset.pattern.permute.xlu0 0
  %167 = vperm.xlu0 %166, %v36
  %v168 = vpop.permute.xlu0 %167
  %171 = vset.pattern.permute.xlu0 0
  %172 = vperm.xlu0 %171, %v37
  %v173 = vpop.permute.xlu0 %172
  %176 = vset.pattern.permute.xlu0 0
  %177 = vperm.xlu0 %176, %v38
  %v178 = vpop.permute.xlu0 %177
  %181 = vset.pattern.permute.xlu0 0
  %182 = vperm.xlu0 %181, %v39
  %v183 = vpop.permute.xlu0 %182
  %186 = vset.pattern.permute.xlu0 0
  %187 = vperm.xlu0 %186, %v40
  %v188 = vpop.permute.xlu0 %187
  %191 = vset.pattern.permute.xlu0 0
  %192 = vperm.xlu0 %191, %v41
  %v193 = vpop.permute.xlu0 %192
  %196 = vset.pattern.permute.xlu0 0
  %197 = vperm.xlu0 %196, %v42
  %v198 = vpop.permute.xlu0 %197
  %201 = vset.pattern.permute.xlu0 0
  %202 = vperm.xlu0 %201, %v43
  %v203 = vpop.permute.xlu0 %202
  %206 = vset.pattern.permute.xlu0 0
  %207 = vperm.xlu0 %206, %v44
  %v208 = vpop.permute.xlu0 %207
  %211 = vset.pattern.permute.xlu0 0
  %212 = vperm.xlu0 %211, %v45
  %v213 = vpop.permute.xlu0 %212
  %216 = vset.pattern.permute.xlu0 0
  %217 = vperm.xlu0 %216, %v46
  %v218 = vpop.permute.xlu0 %217
  %221 = vset.pattern.permute.xlu0 0
  %222 = vperm.xlu0 %221, %v47
  %v223 = vpop.permute.xlu0 %222
  %226 = vset.pattern.permute.xlu0 0
  %227 = vperm.xlu0 %226, %v48
  %v228 = vpop.permute.xlu0 %227
  %231 = vset.pattern.permute.xlu0 0
  %232 = vperm.xlu0 %231, %v49
  %v233 = vpop.permute.xlu0 %232
  %236 = vset.pattern.permute.xlu0 0
  %237 = vperm.xlu0 %236, %v50
  %v238 = vpop.permute.xlu0 %237
  %241 = vset.pattern.permute.xlu0 0
  %242 = vperm.xlu0 %241, %v51
  %v243 = vpop.permute.xlu0 %242
  %246 = vset.pattern.permute.xlu0 0
  %247 = vperm.xlu0 %246, %v52
  %v248 = vpop.permute.xlu0 %247
  %251 = vset.pattern.permute.xlu0 0
  %252 = vperm.xlu0 %251, %v53
  %v253 = vpop.permute.xlu0 %252
  %256 = vset.pattern.permute.xlu0 0
  %257 = vperm.xlu0 %256, %v54
  %v258 = vpop.permute.xlu0 %257
  %261 = vset.pattern.permute.xlu0 0
  %262 = vperm.xlu0 %261, %v55
  %v263 = vpop.permute.xlu0 %262
  %266 = vset.pattern.permute.xlu0 0
  %267 = vperm.xlu0 %266, %v56
  %v268 = vpop.permute.xlu0 %267
  %271 = vset.pattern.permute.xlu0 0
  %272 = vperm.xlu0 %271, %v57
  %v273 = vpop.permute.xlu0 %272
  %276 = vset.pattern.permute.xlu0 0
  %277 = vperm.xlu0 %276, %v58
  %v278 = vpop.permute.xlu0 %277
  %281 = vset.pattern.permute.xlu0 0
  %282 = vperm.xlu0 %281, %v59
  %v283 = vpop.permute.xlu0 %282
  %286 = vset.pattern.permute.xlu0 0
  %287 = vperm.xlu0 %286, %v60
  %v288 = vpop.permute.xlu0 %287
  %291 = vset.pattern.permute.xlu0 0
  %292 = vperm.xlu0 %291, %v61
  %v293 = vpop.permute.xlu0 %292
  %296 = vset.pattern.permute.xlu0 0
  %297 = vperm.xlu0 %296, %v62
  %v298 = vpop.permute.xlu0 %297
  %301 = vset.pattern.permute.xlu0 0
  %302 = vperm.xlu0 %301, %v63
  %v303 = vpop.permute.xlu0 %302
  %306 = vset.pattern.permute.xlu0 0
  %307 = vperm.xlu0 %306, %v64
  %v308 = vpop.permute.xlu0 %307
  %311 = vset.pattern.permute.xlu0 0
  %312 = vperm.xlu0 %311, %v65
  %v313 = vpop.permute.xlu0 %312
  %316 = vset.pattern.permute.xlu0 0
  %317 = vperm.xlu0 %316, %v66
  %v318 = vpop.permute.xlu0 %317
  %321 = vset.pattern.permute.xlu0 0
  %322 = vperm.xlu0 %321, %v67
  %v323 = vpop.permute.xlu0 %322
  %326 = vset.pattern.permute.xlu0 0
  %327 = vperm.xlu0 %326, %v68
  %v328 = vpop.permute.xlu0 %327
  %331 = vset.pattern.permute.xlu0 0
  %332 = vperm.xlu0 %331, %v69
  %v333 = vpop.permute.xlu0 %332
  %336 = vset.pattern.permute.xlu0 0
  %337 = vperm.xlu0 %336, %v70
  %v338 = vpop.permute.xlu0 %337
  %341 = vset.pattern.permute.xlu0 0
  %342 = vperm.xlu0 %341, %v71
  %v343 = vpop.permute.xlu0 %342
  %346 = vset.pattern.permute.xlu0 0
  %347 = vperm.xlu0 %346, %v72
  %v348 = vpop.permute.xlu0 %347
  %351 = vset.pattern.permute.xlu0 0
  %352 = vperm.xlu0 %351, %v73
  %v353 = vpop.permute.xlu0 %352
  %356 = vset.pattern.permute.xlu0 0
  %357 = vperm.xlu0 %356, %v74
  %v358 = vpop.permute.xlu0 %357
  %361 = vset.pattern.permute.xlu0 0
  %362 = vperm.xlu0 %361, %v75
  %v363 = vpop.permute.xlu0 %362
  %366 = vset.pattern.permute.xlu0 0
  %367 = vperm.xlu0 %366, %v76
  %v368 = vpop.permute.xlu0 %367
  %371 = vset.pattern.permute.xlu0 0
  %372 = vperm.xlu0 %371, %v77
  %v373 = vpop.permute.xlu0 %372
  %376 = vset.pattern.permute.xlu0 0
  %377 = vperm.xlu0 %376, %v78
  %v378 = vpop.permute.xlu0 %377
  %381 = vset.pattern.permute.xlu0 0
  %382 = vperm.xlu0 %381, %v79
  %v383 = vpop.permute.xlu0 %382
  %386 = vset.pattern.permute.xlu0 0
  %387 = vperm.xlu0 %386, %v80
  %v388 = vpop.permute.xlu0 %387
  %391 = vset.pattern.permute.xlu0 0
  %392 = vperm.xlu0 %391, %v81
  %v393 = vpop.permute.xlu0 %392
  %396 = vset.pattern.permute.xlu0 0
  %397 = vperm.xlu0 %396, %v82
  %v398 = vpop.permute.xlu0 %397
  %401 = vset.pattern.permute.xlu0 0
  %402 = vperm.xlu0 %401, %v83
  %v403 = vpop.permute.xlu0 %402
  %v405 = vlaneseq
  %v406 = vshrl.u32 %v405, 7
  %v407 = vsub.s32 0, %v406
  %v408 = vrot.slane %v84, %v407
  %v409 = vmul.f32 %v88, %v408
  %v410 = vmul.f32 %v93, %v408
  %v411 = vmul.f32 %v98, %v408
  %v412 = vmul.f32 %v103, %v408
  %v413 = vmul.f32 %v108, %v408
  %v414 = vmul.f32 %v113, %v408
  %v415 = vmul.f32 %v118, %v408
  %v416 = vmul.f32 %v123, %v408
  %v417 = vmul.f32 %v128, %v408
  %v418 = vmul.f32 %v133, %v408
  %v419 = vmul.f32 %v138, %v408
  %v420 = vmul.f32 %v143, %v408
  %v421 = vmul.f32 %v148, %v408
  %v422 = vmul.f32 %v153, %v408
  %v423 = vmul.f32 %v158, %v408
  %v424 = vmul.f32 %v163, %v408
  %v425 = vmul.f32 %v168, %v408
  %v426 = vmul.f32 %v173, %v408
  %v427 = vmul.f32 %v178, %v408
  %v428 = vmul.f32 %v183, %v408
  %v429 = vmul.f32 %v188, %v408
  %v430 = vmul.f32 %v193, %v408
  %v431 = vmul.f32 %v198, %v408
  %v432 = vmul.f32 %v203, %v408
  %v433 = vmul.f32 %v208, %v408
  %v434 = vmul.f32 %v213, %v408
  %v435 = vmul.f32 %v218, %v408
  %v436 = vmul.f32 %v223, %v408
  %v437 = vmul.f32 %v228, %v408
  %v438 = vmul.f32 %v233, %v408
  %v439 = vmul.f32 %v238, %v408
  %v440 = vmul.f32 %v243, %v408
  %v441 = vmul.f32 %v248, %v408
  %v442 = vmul.f32 %v253, %v408
  %v443 = vmul.f32 %v258, %v408
  %v444 = vmul.f32 %v263, %v408
  %v445 = vmul.f32 %v268, %v408
  %v446 = vmul.f32 %v273, %v408
  %v447 = vmul.f32 %v278, %v408
  %v448 = vmul.f32 %v283, %v408
  %v449 = vmul.f32 %v288, %v408
  %v450 = vmul.f32 %v293, %v408
  %v451 = vmul.f32 %v298, %v408
  %v452 = vmul.f32 %v303, %v408
  %v453 = vmul.f32 %v308, %v408
  %v454 = vmul.f32 %v313, %v408
  %v455 = vmul.f32 %v318, %v408
  %v456 = vmul.f32 %v323, %v408
  %v457 = vmul.f32 %v328, %v408
  %v458 = vmul.f32 %v333, %v408
  %v459 = vmul.f32 %v338, %v408
  %v460 = vmul.f32 %v343, %v408
  %v461 = vmul.f32 %v348, %v408
  %v462 = vmul.f32 %v353, %v408
  %v463 = vmul.f32 %v358, %v408
  %v464 = vmul.f32 %v363, %v408
  %v465 = vmul.f32 %v368, %v408
  %v466 = vmul.f32 %v373, %v408
  %v467 = vmul.f32 %v378, %v408
  %v468 = vmul.f32 %v383, %v408
  %v469 = vmul.f32 %v388, %v408
  %v470 = vmul.f32 %v393, %v408
  %v471 = vmul.f32 %v398, %v408
  %v472 = vmul.f32 %v403, %v408
  %473 = vset.pattern.permute.xlu0 1
  %474 = vperm.xlu0 %473, %v20
  %v475 = vpop.permute.xlu0 %474
  %477 = vset.pattern.permute.xlu0 1
  %478 = vperm.xlu0 %477, %v21
  %v479 = vpop.permute.xlu0 %478
  %481 = vset.pattern.permute.xlu0 1
  %482 = vperm.xlu0 %481, %v22
  %v483 = vpop.permute.xlu0 %482
  %485 = vset.pattern.permute.xlu0 1
  %486 = vperm.xlu0 %485, %v23
  %v487 = vpop.permute.xlu0 %486
  %489 = vset.pattern.permute.xlu0 1
  %490 = vperm.xlu0 %489, %v24
  %v491 = vpop.permute.xlu0 %490
  %493 = vset.pattern.permute.xlu0 1
  %494 = vperm.xlu0 %493, %v25
  %v495 = vpop.permute.xlu0 %494
  %497 = vset.pattern.permute.xlu0 1
  %498 = vperm.xlu0 %497, %v26
  %v499 = vpop.permute.xlu0 %498
  %501 = vset.pattern.permute.xlu0 1
  %502 = vperm.xlu0 %501, %v27
  %v503 = vpop.permute.xlu0 %502
  %505 = vset.pattern.permute.xlu0 1
  %506 = vperm.xlu0 %505, %v28
  %v507 = vpop.permute.xlu0 %506
  %509 = vset.pattern.permute.xlu0 1
  %510 = vperm.xlu0 %509, %v29
  %v511 = vpop.permute.xlu0 %510
  %513 = vset.pattern.permute.xlu0 1
  %514 = vperm.xlu0 %513, %v30
  %v515 = vpop.permute.xlu0 %514
  %517 = vset.pattern.permute.xlu0 1
  %518 = vperm.xlu0 %517, %v31
  %v519 = vpop.permute.xlu0 %518
  %521 = vset.pattern.permute.xlu0 1
  %522 = vperm.xlu0 %521, %v32
  %v523 = vpop.permute.xlu0 %522
  %525 = vset.pattern.permute.xlu0 1
  %526 = vperm.xlu0 %525, %v33
  %v527 = vpop.permute.xlu0 %526
  %529 = vset.pattern.permute.xlu0 1
  %530 = vperm.xlu0 %529, %v34
  %v531 = vpop.permute.xlu0 %530
  %533 = vset.pattern.permute.xlu0 1
  %534 = vperm.xlu0 %533, %v35
  %v535 = vpop.permute.xlu0 %534
  %537 = vset.pattern.permute.xlu0 1
  %538 = vperm.xlu0 %537, %v36
  %v539 = vpop.permute.xlu0 %538
  %541 = vset.pattern.permute.xlu0 1
  %542 = vperm.xlu0 %541, %v37
  %v543 = vpop.permute.xlu0 %542
  %545 = vset.pattern.permute.xlu0 1
  %546 = vperm.xlu0 %545, %v38
  %v547 = vpop.permute.xlu0 %546
  %549 = vset.pattern.permute.xlu0 1
  %550 = vperm.xlu0 %549, %v39
  %v551 = vpop.permute.xlu0 %550
  %553 = vset.pattern.permute.xlu0 1
  %554 = vperm.xlu0 %553, %v40
  %v555 = vpop.permute.xlu0 %554
  %557 = vset.pattern.permute.xlu0 1
  %558 = vperm.xlu0 %557, %v41
  %v559 = vpop.permute.xlu0 %558
  %561 = vset.pattern.permute.xlu0 1
  %562 = vperm.xlu0 %561, %v42
  %v563 = vpop.permute.xlu0 %562
  %565 = vset.pattern.permute.xlu0 1
  %566 = vperm.xlu0 %565, %v43
  %v567 = vpop.permute.xlu0 %566
  %569 = vset.pattern.permute.xlu0 1
  %570 = vperm.xlu0 %569, %v44
  %v571 = vpop.permute.xlu0 %570
  %573 = vset.pattern.permute.xlu0 1
  %574 = vperm.xlu0 %573, %v45
  %v575 = vpop.permute.xlu0 %574
  %577 = vset.pattern.permute.xlu0 1
  %578 = vperm.xlu0 %577, %v46
  %v579 = vpop.permute.xlu0 %578
  %581 = vset.pattern.permute.xlu0 1
  %582 = vperm.xlu0 %581, %v47
  %v583 = vpop.permute.xlu0 %582
  %585 = vset.pattern.permute.xlu0 1
  %586 = vperm.xlu0 %585, %v48
  %v587 = vpop.permute.xlu0 %586
  %589 = vset.pattern.permute.xlu0 1
  %590 = vperm.xlu0 %589, %v49
  %v591 = vpop.permute.xlu0 %590
  %593 = vset.pattern.permute.xlu0 1
  %594 = vperm.xlu0 %593, %v50
  %v595 = vpop.permute.xlu0 %594
  %597 = vset.pattern.permute.xlu0 1
  %598 = vperm.xlu0 %597, %v51
  %v599 = vpop.permute.xlu0 %598
  %601 = vset.pattern.permute.xlu0 1
  %602 = vperm.xlu0 %601, %v52
  %v603 = vpop.permute.xlu0 %602
  %605 = vset.pattern.permute.xlu0 1
  %606 = vperm.xlu0 %605, %v53
  %v607 = vpop.permute.xlu0 %606
  %609 = vset.pattern.permute.xlu0 1
  %610 = vperm.xlu0 %609, %v54
  %v611 = vpop.permute.xlu0 %610
  %613 = vset.pattern.permute.xlu0 1
  %614 = vperm.xlu0 %613, %v55
  %v615 = vpop.permute.xlu0 %614
  %617 = vset.pattern.permute.xlu0 1
  %618 = vperm.xlu0 %617, %v56
  %v619 = vpop.permute.xlu0 %618
  %621 = vset.pattern.permute.xlu0 1
  %622 = vperm.xlu0 %621, %v57
  %v623 = vpop.permute.xlu0 %622
  %625 = vset.pattern.permute.xlu0 1
  %626 = vperm.xlu0 %625, %v58
  %v627 = vpop.permute.xlu0 %626
  %629 = vset.pattern.permute.xlu0 1
  %630 = vperm.xlu0 %629, %v59
  %v631 = vpop.permute.xlu0 %630
  %633 = vset.pattern.permute.xlu0 1
  %634 = vperm.xlu0 %633, %v60
  %v635 = vpop.permute.xlu0 %634
  %637 = vset.pattern.permute.xlu0 1
  %638 = vperm.xlu0 %637, %v61
  %v639 = vpop.permute.xlu0 %638
  %641 = vset.pattern.permute.xlu0 1
  %642 = vperm.xlu0 %641, %v62
  %v643 = vpop.permute.xlu0 %642
  %645 = vset.pattern.permute.xlu0 1
  %646 = vperm.xlu0 %645, %v63
  %v647 = vpop.permute.xlu0 %646
  %649 = vset.pattern.permute.xlu0 1
  %650 = vperm.xlu0 %649, %v64
  %v651 = vpop.permute.xlu0 %650
  %653 = vset.pattern.permute.xlu0 1
  %654 = vperm.xlu0 %653, %v65
  %v655 = vpop.permute.xlu0 %654
  %657 = vset.pattern.permute.xlu0 1
  %658 = vperm.xlu0 %657, %v66
  %v659 = vpop.permute.xlu0 %658
  %661 = vset.pattern.permute.xlu0 1
  %662 = vperm.xlu0 %661, %v67
  %v663 = vpop.permute.xlu0 %662
  %665 = vset.pattern.permute.xlu0 1
  %666 = vperm.xlu0 %665, %v68
  %v667 = vpop.permute.xlu0 %666
  %669 = vset.pattern.permute.xlu0 1
  %670 = vperm.xlu0 %669, %v69
  %v671 = vpop.permute.xlu0 %670
  %673 = vset.pattern.permute.xlu0 1
  %674 = vperm.xlu0 %673, %v70
  %v675 = vpop.permute.xlu0 %674
  %677 = vset.pattern.permute.xlu0 1
  %678 = vperm.xlu0 %677, %v71
  %v679 = vpop.permute.xlu0 %678
  %681 = vset.pattern.permute.xlu0 1
  %682 = vperm.xlu0 %681, %v72
  %v683 = vpop.permute.xlu0 %682
  %685 = vset.pattern.permute.xlu0 1
  %686 = vperm.xlu0 %685, %v73
  %v687 = vpop.permute.xlu0 %686
  %689 = vset.pattern.permute.xlu0 1
  %690 = vperm.xlu0 %689, %v74
  %v691 = vpop.permute.xlu0 %690
  %693 = vset.pattern.permute.xlu0 1
  %694 = vperm.xlu0 %693, %v75
  %v695 = vpop.permute.xlu0 %694
  %697 = vset.pattern.permute.xlu0 1
  %698 = vperm.xlu0 %697, %v76
  %v699 = vpop.permute.xlu0 %698
  %701 = vset.pattern.permute.xlu0 1
  %702 = vperm.xlu0 %701, %v77
  %v703 = vpop.permute.xlu0 %702
  %705 = vset.pattern.permute.xlu0 1
  %706 = vperm.xlu0 %705, %v78
  %v707 = vpop.permute.xlu0 %706
  %709 = vset.pattern.permute.xlu0 1
  %710 = vperm.xlu0 %709, %v79
  %v711 = vpop.permute.xlu0 %710
  %713 = vset.pattern.permute.xlu0 1
  %714 = vperm.xlu0 %713, %v80
  %v715 = vpop.permute.xlu0 %714
  %717 = vset.pattern.permute.xlu0 1
  %718 = vperm.xlu0 %717, %v81
  %v719 = vpop.permute.xlu0 %718
  %721 = vset.pattern.permute.xlu0 1
  %722 = vperm.xlu0 %721, %v82
  %v723 = vpop.permute.xlu0 %722
  %725 = vset.pattern.permute.xlu0 1
  %726 = vperm.xlu0 %725, %v83
  %v727 = vpop.permute.xlu0 %726
  %v729 = vlaneseq
  %v730 = vshrl.u32 %v729, 7
  %v731 = vsub.s32 1, %v730
  %v732 = vrot.slane %v84, %v731
  %v733 = vmul.f32 %v475, %v732
  %v734 = vmul.f32 %v479, %v732
  %v735 = vmul.f32 %v483, %v732
  %v736 = vmul.f32 %v487, %v732
  %v737 = vmul.f32 %v491, %v732
  %v738 = vmul.f32 %v495, %v732
  %v739 = vmul.f32 %v499, %v732
  %v740 = vmul.f32 %v503, %v732
  %v741 = vmul.f32 %v507, %v732
  %v742 = vmul.f32 %v511, %v732
  %v743 = vmul.f32 %v515, %v732
  %v744 = vmul.f32 %v519, %v732
  %v745 = vmul.f32 %v523, %v732
  %v746 = vmul.f32 %v527, %v732
  %v747 = vmul.f32 %v531, %v732
  %v748 = vmul.f32 %v535, %v732
  %v749 = vmul.f32 %v539, %v732
  %v750 = vmul.f32 %v543, %v732
  %v751 = vmul.f32 %v547, %v732
  %v752 = vmul.f32 %v551, %v732
  %v753 = vmul.f32 %v555, %v732
  %v754 = vmul.f32 %v559, %v732
  %v755 = vmul.f32 %v563, %v732
  %v756 = vmul.f32 %v567, %v732
  %v757 = vmul.f32 %v571, %v732
  %v758 = vmul.f32 %v575, %v732
  %v759 = vmul.f32 %v579, %v732
  %v760 = vmul.f32 %v583, %v732
  %v761 = vmul.f32 %v587, %v732
  %v762 = vmul.f32 %v591, %v732
  %v763 = vmul.f32 %v595, %v732
  %v764 = vmul.f32 %v599, %v732
  %v765 = vmul.f32 %v603, %v732
  %v766 = vmul.f32 %v607, %v732
  %v767 = vmul.f32 %v611, %v732
  %v768 = vmul.f32 %v615, %v732
  %v769 = vmul.f32 %v619, %v732
  %v770 = vmul.f32 %v623, %v732
  %v771 = vmul.f32 %v627, %v732
  %v772 = vmul.f32 %v631, %v732
  %v773 = vmul.f32 %v635, %v732
  %v774 = vmul.f32 %v639, %v732
  %v775 = vmul.f32 %v643, %v732
  %v776 = vmul.f32 %v647, %v732
  %v777 = vmul.f32 %v651, %v732
  %v778 = vmul.f32 %v655, %v732
  %v779 = vmul.f32 %v659, %v732
  %v780 = vmul.f32 %v663, %v732
  %v781 = vmul.f32 %v667, %v732
  %v782 = vmul.f32 %v671, %v732
  %v783 = vmul.f32 %v675, %v732
  %v784 = vmul.f32 %v679, %v732
  %v785 = vmul.f32 %v683, %v732
  %v786 = vmul.f32 %v687, %v732
  %v787 = vmul.f32 %v691, %v732
  %v788 = vmul.f32 %v695, %v732
  %v789 = vmul.f32 %v699, %v732
  %v790 = vmul.f32 %v703, %v732
  %v791 = vmul.f32 %v707, %v732
  %v792 = vmul.f32 %v711, %v732
  %v793 = vmul.f32 %v715, %v732
  %v794 = vmul.f32 %v719, %v732
  %v795 = vmul.f32 %v723, %v732
  %v796 = vmul.f32 %v727, %v732
  %v797 = vadd.f32 %v409, %v733
  %v798 = vadd.f32 %v410, %v734
  %v799 = vadd.f32 %v411, %v735
  %v800 = vadd.f32 %v412, %v736
  %v801 = vadd.f32 %v413, %v737
  %v802 = vadd.f32 %v414, %v738
  %v803 = vadd.f32 %v415, %v739
  %v804 = vadd.f32 %v416, %v740
  %v805 = vadd.f32 %v417, %v741
  %v806 = vadd.f32 %v418, %v742
  %v807 = vadd.f32 %v419, %v743
  %v808 = vadd.f32 %v420, %v744
  %v809 = vadd.f32 %v421, %v745
  %v810 = vadd.f32 %v422, %v746
  %v811 = vadd.f32 %v423, %v747
  %v812 = vadd.f32 %v424, %v748
  %v813 = vadd.f32 %v425, %v749
  %v814 = vadd.f32 %v426, %v750
  %v815 = vadd.f32 %v427, %v751
  %v816 = vadd.f32 %v428, %v752
  %v817 = vadd.f32 %v429, %v753
  %v818 = vadd.f32 %v430, %v754
  %v819 = vadd.f32 %v431, %v755
  %v820 = vadd.f32 %v432, %v756
  %v821 = vadd.f32 %v433, %v757
  %v822 = vadd.f32 %v434, %v758
  %v823 = vadd.f32 %v435, %v759
  %v824 = vadd.f32 %v436, %v760
  %v825 = vadd.f32 %v437, %v761
  %v826 = vadd.f32 %v438, %v762
  %v827 = vadd.f32 %v439, %v763
  %v828 = vadd.f32 %v440, %v764
  %v829 = vadd.f32 %v441, %v765
  %v830 = vadd.f32 %v442, %v766
  %v831 = vadd.f32 %v443, %v767
  %v832 = vadd.f32 %v444, %v768
  %v833 = vadd.f32 %v445, %v769
  %v834 = vadd.f32 %v446, %v770
  %v835 = vadd.f32 %v447, %v771
  %v836 = vadd.f32 %v448, %v772
  %v837 = vadd.f32 %v449, %v773
  %v838 = vadd.f32 %v450, %v774
  %v839 = vadd.f32 %v451, %v775
  %v840 = vadd.f32 %v452, %v776
  %v841 = vadd.f32 %v453, %v777
  %v842 = vadd.f32 %v454, %v778
  %v843 = vadd.f32 %v455, %v779
  %v844 = vadd.f32 %v456, %v780
  %v845 = vadd.f32 %v457, %v781
  %v846 = vadd.f32 %v458, %v782
  %v847 = vadd.f32 %v459, %v783
  %v848 = vadd.f32 %v460, %v784
  %v849 = vadd.f32 %v461, %v785
  %v850 = vadd.f32 %v462, %v786
  %v851 = vadd.f32 %v463, %v787
  %v852 = vadd.f32 %v464, %v788
  %v853 = vadd.f32 %v465, %v789
  %v854 = vadd.f32 %v466, %v790
  %v855 = vadd.f32 %v467, %v791
  %v856 = vadd.f32 %v468, %v792
  %v857 = vadd.f32 %v469, %v793
  %v858 = vadd.f32 %v470, %v794
  %v859 = vadd.f32 %v471, %v795
  %v860 = vadd.f32 %v472, %v796
  %861 = vset.pattern.permute.xlu0 2
  %862 = vperm.xlu0 %861, %v20
  %v863 = vpop.permute.xlu0 %862
  %865 = vset.pattern.permute.xlu0 2
  %866 = vperm.xlu0 %865, %v21
  %v867 = vpop.permute.xlu0 %866
  %869 = vset.pattern.permute.xlu0 2
  %870 = vperm.xlu0 %869, %v22
  %v871 = vpop.permute.xlu0 %870
  %873 = vset.pattern.permute.xlu0 2
  %874 = vperm.xlu0 %873, %v23
  %v875 = vpop.permute.xlu0 %874
  %877 = vset.pattern.permute.xlu0 2
  %878 = vperm.xlu0 %877, %v24
  %v879 = vpop.permute.xlu0 %878
  %881 = vset.pattern.permute.xlu0 2
  %882 = vperm.xlu0 %881, %v25
  %v883 = vpop.permute.xlu0 %882
  %885 = vset.pattern.permute.xlu0 2
  %886 = vperm.xlu0 %885, %v26
  %v887 = vpop.permute.xlu0 %886
  %889 = vset.pattern.permute.xlu0 2
  %890 = vperm.xlu0 %889, %v27
  %v891 = vpop.permute.xlu0 %890
  %893 = vset.pattern.permute.xlu0 2
  %894 = vperm.xlu0 %893, %v28
  %v895 = vpop.permute.xlu0 %894
  %897 = vset.pattern.permute.xlu0 2
  %898 = vperm.xlu0 %897, %v29
  %v899 = vpop.permute.xlu0 %898
  %901 = vset.pattern.permute.xlu0 2
  %902 = vperm.xlu0 %901, %v30
  %v903 = vpop.permute.xlu0 %902
  %905 = vset.pattern.permute.xlu0 2
  %906 = vperm.xlu0 %905, %v31
  %v907 = vpop.permute.xlu0 %906
  %909 = vset.pattern.permute.xlu0 2
  %910 = vperm.xlu0 %909, %v32
  %v911 = vpop.permute.xlu0 %910
  %913 = vset.pattern.permute.xlu0 2
  %914 = vperm.xlu0 %913, %v33
  %v915 = vpop.permute.xlu0 %914
  %917 = vset.pattern.permute.xlu0 2
  %918 = vperm.xlu0 %917, %v34
  %v919 = vpop.permute.xlu0 %918
  %921 = vset.pattern.permute.xlu0 2
  %922 = vperm.xlu0 %921, %v35
  %v923 = vpop.permute.xlu0 %922
  %925 = vset.pattern.permute.xlu0 2
  %926 = vperm.xlu0 %925, %v36
  %v927 = vpop.permute.xlu0 %926
  %929 = vset.pattern.permute.xlu0 2
  %930 = vperm.xlu0 %929, %v37
  %v931 = vpop.permute.xlu0 %930
  %933 = vset.pattern.permute.xlu0 2
  %934 = vperm.xlu0 %933, %v38
  %v935 = vpop.permute.xlu0 %934
  %937 = vset.pattern.permute.xlu0 2
  %938 = vperm.xlu0 %937, %v39
  %v939 = vpop.permute.xlu0 %938
  %941 = vset.pattern.permute.xlu0 2
  %942 = vperm.xlu0 %941, %v40
  %v943 = vpop.permute.xlu0 %942
  %945 = vset.pattern.permute.xlu0 2
  %946 = vperm.xlu0 %945, %v41
  %v947 = vpop.permute.xlu0 %946
  %949 = vset.pattern.permute.xlu0 2
  %950 = vperm.xlu0 %949, %v42
  %v951 = vpop.permute.xlu0 %950
  %953 = vset.pattern.permute.xlu0 2
  %954 = vperm.xlu0 %953, %v43
  %v955 = vpop.permute.xlu0 %954
  %957 = vset.pattern.permute.xlu0 2
  %958 = vperm.xlu0 %957, %v44
  %v959 = vpop.permute.xlu0 %958
  %961 = vset.pattern.permute.xlu0 2
  %962 = vperm.xlu0 %961, %v45
  %v963 = vpop.permute.xlu0 %962
  %965 = vset.pattern.permute.xlu0 2
  %966 = vperm.xlu0 %965, %v46
  %v967 = vpop.permute.xlu0 %966
  %969 = vset.pattern.permute.xlu0 2
  %970 = vperm.xlu0 %969, %v47
  %v971 = vpop.permute.xlu0 %970
  %973 = vset.pattern.permute.xlu0 2
  %974 = vperm.xlu0 %973, %v48
  %v975 = vpop.permute.xlu0 %974
  %977 = vset.pattern.permute.xlu0 2
  %978 = vperm.xlu0 %977, %v49
  %v979 = vpop.permute.xlu0 %978
  %981 = vset.pattern.permute.xlu0 2
  %982 = vperm.xlu0 %981, %v50
  %v983 = vpop.permute.xlu0 %982
  %985 = vset.pattern.permute.xlu0 2
  %986 = vperm.xlu0 %985, %v51
  %v987 = vpop.permute.xlu0 %986
  %989 = vset.pattern.permute.xlu0 2
  %990 = vperm.xlu0 %989, %v52
  %v991 = vpop.permute.xlu0 %990
  %993 = vset.pattern.permute.xlu0 2
  %994 = vperm.xlu0 %993, %v53
  %v995 = vpop.permute.xlu0 %994
  %997 = vset.pattern.permute.xlu0 2
  %998 = vperm.xlu0 %997, %v54
  %v999 = vpop.permute.xlu0 %998
  %1001 = vset.pattern.permute.xlu0 2
  %1002 = vperm.xlu0 %1001, %v55
  %v1003 = vpop.permute.xlu0 %1002
  %1005 = vset.pattern.permute.xlu0 2
  %1006 = vperm.xlu0 %1005, %v56
  %v1007 = vpop.permute.xlu0 %1006
  %1009 = vset.pattern.permute.xlu0 2
  %1010 = vperm.xlu0 %1009, %v57
  %v1011 = vpop.permute.xlu0 %1010
  %1013 = vset.pattern.permute.xlu0 2
  %1014 = vperm.xlu0 %1013, %v58
  %v1015 = vpop.permute.xlu0 %1014
  %1017 = vset.pattern.permute.xlu0 2
  %1018 = vperm.xlu0 %1017, %v59
  %v1019 = vpop.permute.xlu0 %1018
  %1021 = vset.pattern.permute.xlu0 2
  %1022 = vperm.xlu0 %1021, %v60
  %v1023 = vpop.permute.xlu0 %1022
  %1025 = vset.pattern.permute.xlu0 2
  %1026 = vperm.xlu0 %1025, %v61
  %v1027 = vpop.permute.xlu0 %1026
  %1029 = vset.pattern.permute.xlu0 2
  %1030 = vperm.xlu0 %1029, %v62
  %v1031 = vpop.permute.xlu0 %1030
  %1033 = vset.pattern.permute.xlu0 2
  %1034 = vperm.xlu0 %1033, %v63
  %v1035 = vpop.permute.xlu0 %1034
  %1037 = vset.pattern.permute.xlu0 2
  %1038 = vperm.xlu0 %1037, %v64
  %v1039 = vpop.permute.xlu0 %1038
  %1041 = vset.pattern.permute.xlu0 2
  %1042 = vperm.xlu0 %1041, %v65
  %v1043 = vpop.permute.xlu0 %1042
  %1045 = vset.pattern.permute.xlu0 2
  %1046 = vperm.xlu0 %1045, %v66
  %v1047 = vpop.permute.xlu0 %1046
  %1049 = vset.pattern.permute.xlu0 2
  %1050 = vperm.xlu0 %1049, %v67
  %v1051 = vpop.permute.xlu0 %1050
  %1053 = vset.pattern.permute.xlu0 2
  %1054 = vperm.xlu0 %1053, %v68
  %v1055 = vpop.permute.xlu0 %1054
  %1057 = vset.pattern.permute.xlu0 2
  %1058 = vperm.xlu0 %1057, %v69
  %v1059 = vpop.permute.xlu0 %1058
  %1061 = vset.pattern.permute.xlu0 2
  %1062 = vperm.xlu0 %1061, %v70
  %v1063 = vpop.permute.xlu0 %1062
  %1065 = vset.pattern.permute.xlu0 2
  %1066 = vperm.xlu0 %1065, %v71
  %v1067 = vpop.permute.xlu0 %1066
  %1069 = vset.pattern.permute.xlu0 2
  %1070 = vperm.xlu0 %1069, %v72
  %v1071 = vpop.permute.xlu0 %1070
  %1073 = vset.pattern.permute.xlu0 2
  %1074 = vperm.xlu0 %1073, %v73
  %v1075 = vpop.permute.xlu0 %1074
  %1077 = vset.pattern.permute.xlu0 2
  %1078 = vperm.xlu0 %1077, %v74
  %v1079 = vpop.permute.xlu0 %1078
  %1081 = vset.pattern.permute.xlu0 2
  %1082 = vperm.xlu0 %1081, %v75
  %v1083 = vpop.permute.xlu0 %1082
  %1085 = vset.pattern.permute.xlu0 2
  %1086 = vperm.xlu0 %1085, %v76
  %v1087 = vpop.permute.xlu0 %1086
  %1089 = vset.pattern.permute.xlu0 2
  %1090 = vperm.xlu0 %1089, %v77
  %v1091 = vpop.permute.xlu0 %1090
  %1093 = vset.pattern.permute.xlu0 2
  %1094 = vperm.xlu0 %1093, %v78
  %v1095 = vpop.permute.xlu0 %1094
  %1097 = vset.pattern.permute.xlu0 2
  %1098 = vperm.xlu0 %1097, %v79
  %v1099 = vpop.permute.xlu0 %1098
  %1101 = vset.pattern.permute.xlu0 2
  %1102 = vperm.xlu0 %1101, %v80
  %v1103 = vpop.permute.xlu0 %1102
  %1105 = vset.pattern.permute.xlu0 2
  %1106 = vperm.xlu0 %1105, %v81
  %v1107 = vpop.permute.xlu0 %1106
  %1109 = vset.pattern.permute.xlu0 2
  %1110 = vperm.xlu0 %1109, %v82
  %v1111 = vpop.permute.xlu0 %1110
  %1113 = vset.pattern.permute.xlu0 2
  %1114 = vperm.xlu0 %1113, %v83
  %v1115 = vpop.permute.xlu0 %1114
  %v1117 = vlaneseq
  %v1118 = vshrl.u32 %v1117, 7
  %v1119 = vsub.s32 2, %v1118
  %v1120 = vrot.slane %v84, %v1119
  %v1121 = vmul.f32 %v863, %v1120
  %v1122 = vmul.f32 %v867, %v1120
  %v1123 = vmul.f32 %v871, %v1120
  %v1124 = vmul.f32 %v875, %v1120
  %v1125 = vmul.f32 %v879, %v1120
  %v1126 = vmul.f32 %v883, %v1120
  %v1127 = vmul.f32 %v887, %v1120
  %v1128 = vmul.f32 %v891, %v1120
  %v1129 = vmul.f32 %v895, %v1120
  %v1130 = vmul.f32 %v899, %v1120
  %v1131 = vmul.f32 %v903, %v1120
  %v1132 = vmul.f32 %v907, %v1120
  %v1133 = vmul.f32 %v911, %v1120
  %v1134 = vmul.f32 %v915, %v1120
  %v1135 = vmul.f32 %v919, %v1120
  %v1136 = vmul.f32 %v923, %v1120
  %v1137 = vmul.f32 %v927, %v1120
  %v1138 = vmul.f32 %v931, %v1120
  %v1139 = vmul.f32 %v935, %v1120
  %v1140 = vmul.f32 %v939, %v1120
  %v1141 = vmul.f32 %v943, %v1120
  %v1142 = vmul.f32 %v947, %v1120
  %v1143 = vmul.f32 %v951, %v1120
  %v1144 = vmul.f32 %v955, %v1120
  %v1145 = vmul.f32 %v959, %v1120
  %v1146 = vmul.f32 %v963, %v1120
  %v1147 = vmul.f32 %v967, %v1120
  %v1148 = vmul.f32 %v971, %v1120
  %v1149 = vmul.f32 %v975, %v1120
  %v1150 = vmul.f32 %v979, %v1120
  %v1151 = vmul.f32 %v983, %v1120
  %v1152 = vmul.f32 %v987, %v1120
  %v1153 = vmul.f32 %v991, %v1120
  %v1154 = vmul.f32 %v995, %v1120
  %v1155 = vmul.f32 %v999, %v1120
  %v1156 = vmul.f32 %v1003, %v1120
  %v1157 = vmul.f32 %v1007, %v1120
  %v1158 = vmul.f32 %v1011, %v1120
  %v1159 = vmul.f32 %v1015, %v1120
  %v1160 = vmul.f32 %v1019, %v1120
  %v1161 = vmul.f32 %v1023, %v1120
  %v1162 = vmul.f32 %v1027, %v1120
  %v1163 = vmul.f32 %v1031, %v1120
  %v1164 = vmul.f32 %v1035, %v1120
  %v1165 = vmul.f32 %v1039, %v1120
  %v1166 = vmul.f32 %v1043, %v1120
  %v1167 = vmul.f32 %v1047, %v1120
  %v1168 = vmul.f32 %v1051, %v1120
  %v1169 = vmul.f32 %v1055, %v1120
  %v1170 = vmul.f32 %v1059, %v1120
  %v1171 = vmul.f32 %v1063, %v1120
  %v1172 = vmul.f32 %v1067, %v1120
  %v1173 = vmul.f32 %v1071, %v1120
  %v1174 = vmul.f32 %v1075, %v1120
  %v1175 = vmul.f32 %v1079, %v1120
  %v1176 = vmul.f32 %v1083, %v1120
  %v1177 = vmul.f32 %v1087, %v1120
  %v1178 = vmul.f32 %v1091, %v1120
  %v1179 = vmul.f32 %v1095, %v1120
  %v1180 = vmul.f32 %v1099, %v1120
  %v1181 = vmul.f32 %v1103, %v1120
  %v1182 = vmul.f32 %v1107, %v1120
  %v1183 = vmul.f32 %v1111, %v1120
  %v1184 = vmul.f32 %v1115, %v1120
  %v1185 = vadd.f32 %v797, %v1121
  %v1186 = vadd.f32 %v798, %v1122
  %v1187 = vadd.f32 %v799, %v1123
  %v1188 = vadd.f32 %v800, %v1124
  %v1189 = vadd.f32 %v801, %v1125
  %v1190 = vadd.f32 %v802, %v1126
  %v1191 = vadd.f32 %v803, %v1127
  %v1192 = vadd.f32 %v804, %v1128
  %v1193 = vadd.f32 %v805, %v1129
  %v1194 = vadd.f32 %v806, %v1130
  %v1195 = vadd.f32 %v807, %v1131
  %v1196 = vadd.f32 %v808, %v1132
  %v1197 = vadd.f32 %v809, %v1133
  %v1198 = vadd.f32 %v810, %v1134
  %v1199 = vadd.f32 %v811, %v1135
  %v1200 = vadd.f32 %v812, %v1136
  %v1201 = vadd.f32 %v813, %v1137
  %v1202 = vadd.f32 %v814, %v1138
  %v1203 = vadd.f32 %v815, %v1139
  %v1204 = vadd.f32 %v816, %v1140
  %v1205 = vadd.f32 %v817, %v1141
  %v1206 = vadd.f32 %v818, %v1142
  %v1207 = vadd.f32 %v819, %v1143
  %v1208 = vadd.f32 %v820, %v1144
  %v1209 = vadd.f32 %v821, %v1145
  %v1210 = vadd.f32 %v822, %v1146
  %v1211 = vadd.f32 %v823, %v1147
  %v1212 = vadd.f32 %v824, %v1148
  %v1213 = vadd.f32 %v825, %v1149
  %v1214 = vadd.f32 %v826, %v1150
  %v1215 = vadd.f32 %v827, %v1151
  %v1216 = vadd.f32 %v828, %v1152
  %v1217 = vadd.f32 %v829, %v1153
  %v1218 = vadd.f32 %v830, %v1154
  %v1219 = vadd.f32 %v831, %v1155
  %v1220 = vadd.f32 %v832, %v1156
  %v1221 = vadd.f32 %v833, %v1157
  %v1222 = vadd.f32 %v834, %v1158
  %v1223 = vadd.f32 %v835, %v1159
  %v1224 = vadd.f32 %v836, %v1160
  %v1225 = vadd.f32 %v837, %v1161
  %v1226 = vadd.f32 %v838, %v1162
  %v1227 = vadd.f32 %v839, %v1163
  %v1228 = vadd.f32 %v840, %v1164
  %v1229 = vadd.f32 %v841, %v1165
  %v1230 = vadd.f32 %v842, %v1166
  %v1231 = vadd.f32 %v843, %v1167
  %v1232 = vadd.f32 %v844, %v1168
  %v1233 = vadd.f32 %v845, %v1169
  %v1234 = vadd.f32 %v846, %v1170
  %v1235 = vadd.f32 %v847, %v1171
  %v1236 = vadd.f32 %v848, %v1172
  %v1237 = vadd.f32 %v849, %v1173
  %v1238 = vadd.f32 %v850, %v1174
  %v1239 = vadd.f32 %v851, %v1175
  %v1240 = vadd.f32 %v852, %v1176
  %v1241 = vadd.f32 %v853, %v1177
  %v1242 = vadd.f32 %v854, %v1178
  %v1243 = vadd.f32 %v855, %v1179
  %v1244 = vadd.f32 %v856, %v1180
  %v1245 = vadd.f32 %v857, %v1181
  %v1246 = vadd.f32 %v858, %v1182
  %v1247 = vadd.f32 %v859, %v1183
  %v1248 = vadd.f32 %v860, %v1184
  %1249 = vset.pattern.permute.xlu0 3
  %1250 = vperm.xlu0 %1249, %v20
  %v1251 = vpop.permute.xlu0 %1250
  %1253 = vset.pattern.permute.xlu0 3
  %1254 = vperm.xlu0 %1253, %v21
  %v1255 = vpop.permute.xlu0 %1254
  %1257 = vset.pattern.permute.xlu0 3
  %1258 = vperm.xlu0 %1257, %v22
  %v1259 = vpop.permute.xlu0 %1258
  %1261 = vset.pattern.permute.xlu0 3
  %1262 = vperm.xlu0 %1261, %v23
  %v1263 = vpop.permute.xlu0 %1262
  %1265 = vset.pattern.permute.xlu0 3
  %1266 = vperm.xlu0 %1265, %v24
  %v1267 = vpop.permute.xlu0 %1266
  %1269 = vset.pattern.permute.xlu0 3
  %1270 = vperm.xlu0 %1269, %v25
  %v1271 = vpop.permute.xlu0 %1270
  %1273 = vset.pattern.permute.xlu0 3
  %1274 = vperm.xlu0 %1273, %v26
  %v1275 = vpop.permute.xlu0 %1274
  %1277 = vset.pattern.permute.xlu0 3
  %1278 = vperm.xlu0 %1277, %v27
  %v1279 = vpop.permute.xlu0 %1278
  %1281 = vset.pattern.permute.xlu0 3
  %1282 = vperm.xlu0 %1281, %v28
  %v1283 = vpop.permute.xlu0 %1282
  %1285 = vset.pattern.permute.xlu0 3
  %1286 = vperm.xlu0 %1285, %v29
  %v1287 = vpop.permute.xlu0 %1286
  %1289 = vset.pattern.permute.xlu0 3
  %1290 = vperm.xlu0 %1289, %v30
  %v1291 = vpop.permute.xlu0 %1290
  %1293 = vset.pattern.permute.xlu0 3
  %1294 = vperm.xlu0 %1293, %v31
  %v1295 = vpop.permute.xlu0 %1294
  %1297 = vset.pattern.permute.xlu0 3
  %1298 = vperm.xlu0 %1297, %v32
  %v1299 = vpop.permute.xlu0 %1298
  %1301 = vset.pattern.permute.xlu0 3
  %1302 = vperm.xlu0 %1301, %v33
  %v1303 = vpop.permute.xlu0 %1302
  %1305 = vset.pattern.permute.xlu0 3
  %1306 = vperm.xlu0 %1305, %v34
  %v1307 = vpop.permute.xlu0 %1306
  %1309 = vset.pattern.permute.xlu0 3
  %1310 = vperm.xlu0 %1309, %v35
  %v1311 = vpop.permute.xlu0 %1310
  %1313 = vset.pattern.permute.xlu0 3
  %1314 = vperm.xlu0 %1313, %v36
  %v1315 = vpop.permute.xlu0 %1314
  %1317 = vset.pattern.permute.xlu0 3
  %1318 = vperm.xlu0 %1317, %v37
  %v1319 = vpop.permute.xlu0 %1318
  %1321 = vset.pattern.permute.xlu0 3
  %1322 = vperm.xlu0 %1321, %v38
  %v1323 = vpop.permute.xlu0 %1322
  %1325 = vset.pattern.permute.xlu0 3
  %1326 = vperm.xlu0 %1325, %v39
  %v1327 = vpop.permute.xlu0 %1326
  %1329 = vset.pattern.permute.xlu0 3
  %1330 = vperm.xlu0 %1329, %v40
  %v1331 = vpop.permute.xlu0 %1330
  %1333 = vset.pattern.permute.xlu0 3
  %1334 = vperm.xlu0 %1333, %v41
  %v1335 = vpop.permute.xlu0 %1334
  %1337 = vset.pattern.permute.xlu0 3
  %1338 = vperm.xlu0 %1337, %v42
  %v1339 = vpop.permute.xlu0 %1338
  %1341 = vset.pattern.permute.xlu0 3
  %1342 = vperm.xlu0 %1341, %v43
  %v1343 = vpop.permute.xlu0 %1342
  %1345 = vset.pattern.permute.xlu0 3
  %1346 = vperm.xlu0 %1345, %v44
  %v1347 = vpop.permute.xlu0 %1346
  %1349 = vset.pattern.permute.xlu0 3
  %1350 = vperm.xlu0 %1349, %v45
  %v1351 = vpop.permute.xlu0 %1350
  %1353 = vset.pattern.permute.xlu0 3
  %1354 = vperm.xlu0 %1353, %v46
  %v1355 = vpop.permute.xlu0 %1354
  %1357 = vset.pattern.permute.xlu0 3
  %1358 = vperm.xlu0 %1357, %v47
  %v1359 = vpop.permute.xlu0 %1358
  %1361 = vset.pattern.permute.xlu0 3
  %1362 = vperm.xlu0 %1361, %v48
  %v1363 = vpop.permute.xlu0 %1362
  %1365 = vset.pattern.permute.xlu0 3
  %1366 = vperm.xlu0 %1365, %v49
  %v1367 = vpop.permute.xlu0 %1366
  %1369 = vset.pattern.permute.xlu0 3
  %1370 = vperm.xlu0 %1369, %v50
  %v1371 = vpop.permute.xlu0 %1370
  %1373 = vset.pattern.permute.xlu0 3
  %1374 = vperm.xlu0 %1373, %v51
  %v1375 = vpop.permute.xlu0 %1374
  %1377 = vset.pattern.permute.xlu0 3
  %1378 = vperm.xlu0 %1377, %v52
  %v1379 = vpop.permute.xlu0 %1378
  %1381 = vset.pattern.permute.xlu0 3
  %1382 = vperm.xlu0 %1381, %v53
  %v1383 = vpop.permute.xlu0 %1382
  %1385 = vset.pattern.permute.xlu0 3
  %1386 = vperm.xlu0 %1385, %v54
  %v1387 = vpop.permute.xlu0 %1386
  %1389 = vset.pattern.permute.xlu0 3
  %1390 = vperm.xlu0 %1389, %v55
  %v1391 = vpop.permute.xlu0 %1390
  %1393 = vset.pattern.permute.xlu0 3
  %1394 = vperm.xlu0 %1393, %v56
  %v1395 = vpop.permute.xlu0 %1394
  %1397 = vset.pattern.permute.xlu0 3
  %1398 = vperm.xlu0 %1397, %v57
  %v1399 = vpop.permute.xlu0 %1398
  %1401 = vset.pattern.permute.xlu0 3
  %1402 = vperm.xlu0 %1401, %v58
  %v1403 = vpop.permute.xlu0 %1402
  %1405 = vset.pattern.permute.xlu0 3
  %1406 = vperm.xlu0 %1405, %v59
  %v1407 = vpop.permute.xlu0 %1406
  %1409 = vset.pattern.permute.xlu0 3
  %1410 = vperm.xlu0 %1409, %v60
  %v1411 = vpop.permute.xlu0 %1410
  %1413 = vset.pattern.permute.xlu0 3
  %1414 = vperm.xlu0 %1413, %v61
  %v1415 = vpop.permute.xlu0 %1414
  %1417 = vset.pattern.permute.xlu0 3
  %1418 = vperm.xlu0 %1417, %v62
  %v1419 = vpop.permute.xlu0 %1418
  %1421 = vset.pattern.permute.xlu0 3
  %1422 = vperm.xlu0 %1421, %v63
  %v1423 = vpop.permute.xlu0 %1422
  %1425 = vset.pattern.permute.xlu0 3
  %1426 = vperm.xlu0 %1425, %v64
  %v1427 = vpop.permute.xlu0 %1426
  %1429 = vset.pattern.permute.xlu0 3
  %1430 = vperm.xlu0 %1429, %v65
  %v1431 = vpop.permute.xlu0 %1430
  %1433 = vset.pattern.permute.xlu0 3
  %1434 = vperm.xlu0 %1433, %v66
  %v1435 = vpop.permute.xlu0 %1434
  %1437 = vset.pattern.permute.xlu0 3
  %1438 = vperm.xlu0 %1437, %v67
  %v1439 = vpop.permute.xlu0 %1438
  %1441 = vset.pattern.permute.xlu0 3
  %1442 = vperm.xlu0 %1441, %v68
  %v1443 = vpop.permute.xlu0 %1442
  %1445 = vset.pattern.permute.xlu0 3
  %1446 = vperm.xlu0 %1445, %v69
  %v1447 = vpop.permute.xlu0 %1446
  %1449 = vset.pattern.permute.xlu0 3
  %1450 = vperm.xlu0 %1449, %v70
  %v1451 = vpop.permute.xlu0 %1450
  %1453 = vset.pattern.permute.xlu0 3
  %1454 = vperm.xlu0 %1453, %v71
  %v1455 = vpop.permute.xlu0 %1454
  %1457 = vset.pattern.permute.xlu0 3
  %1458 = vperm.xlu0 %1457, %v72
  %v1459 = vpop.permute.xlu0 %1458
  %1461 = vset.pattern.permute.xlu0 3
  %1462 = vperm.xlu0 %1461, %v73
  %v1463 = vpop.permute.xlu0 %1462
  %1465 = vset.pattern.permute.xlu0 3
  %1466 = vperm.xlu0 %1465, %v74
  %v1467 = vpop.permute.xlu0 %1466
  %1469 = vset.pattern.permute.xlu0 3
  %1470 = vperm.xlu0 %1469, %v75
  %v1471 = vpop.permute.xlu0 %1470
  %1473 = vset.pattern.permute.xlu0 3
  %1474 = vperm.xlu0 %1473, %v76
  %v1475 = vpop.permute.xlu0 %1474
  %1477 = vset.pattern.permute.xlu0 3
  %1478 = vperm.xlu0 %1477, %v77
  %v1479 = vpop.permute.xlu0 %1478
  %1481 = vset.pattern.permute.xlu0 3
  %1482 = vperm.xlu0 %1481, %v78
  %v1483 = vpop.permute.xlu0 %1482
  %1485 = vset.pattern.permute.xlu0 3
  %1486 = vperm.xlu0 %1485, %v79
  %v1487 = vpop.permute.xlu0 %1486
  %1489 = vset.pattern.permute.xlu0 3
  %1490 = vperm.xlu0 %1489, %v80
  %v1491 = vpop.permute.xlu0 %1490
  %1493 = vset.pattern.permute.xlu0 3
  %1494 = vperm.xlu0 %1493, %v81
  %v1495 = vpop.permute.xlu0 %1494
  %1497 = vset.pattern.permute.xlu0 3
  %1498 = vperm.xlu0 %1497, %v82
  %v1499 = vpop.permute.xlu0 %1498
  %1501 = vset.pattern.permute.xlu0 3
  %1502 = vperm.xlu0 %1501, %v83
  %v1503 = vpop.permute.xlu0 %1502
  %v1505 = vlaneseq
  %v1506 = vshrl.u32 %v1505, 7
  %v1507 = vsub.s32 3, %v1506
  %v1508 = vrot.slane %v84, %v1507
  %v1509 = vmul.f32 %v1251, %v1508
  %v1510 = vmul.f32 %v1255, %v1508
  %v1511 = vmul.f32 %v1259, %v1508
  %v1512 = vmul.f32 %v1263, %v1508
  %v1513 = vmul.f32 %v1267, %v1508
  %v1514 = vmul.f32 %v1271, %v1508
  %v1515 = vmul.f32 %v1275, %v1508
  %v1516 = vmul.f32 %v1279, %v1508
  %v1517 = vmul.f32 %v1283, %v1508
  %v1518 = vmul.f32 %v1287, %v1508
  %v1519 = vmul.f32 %v1291, %v1508
  %v1520 = vmul.f32 %v1295, %v1508
  %v1521 = vmul.f32 %v1299, %v1508
  %v1522 = vmul.f32 %v1303, %v1508
  %v1523 = vmul.f32 %v1307, %v1508
  %v1524 = vmul.f32 %v1311, %v1508
  %v1525 = vmul.f32 %v1315, %v1508
  %v1526 = vmul.f32 %v1319, %v1508
  %v1527 = vmul.f32 %v1323, %v1508
  %v1528 = vmul.f32 %v1327, %v1508
  %v1529 = vmul.f32 %v1331, %v1508
  %v1530 = vmul.f32 %v1335, %v1508
  %v1531 = vmul.f32 %v1339, %v1508
  %v1532 = vmul.f32 %v1343, %v1508
  %v1533 = vmul.f32 %v1347, %v1508
  %v1534 = vmul.f32 %v1351, %v1508
  %v1535 = vmul.f32 %v1355, %v1508
  %v1536 = vmul.f32 %v1359, %v1508
  %v1537 = vmul.f32 %v1363, %v1508
  %v1538 = vmul.f32 %v1367, %v1508
  %v1539 = vmul.f32 %v1371, %v1508
  %v1540 = vmul.f32 %v1375, %v1508
  %v1541 = vmul.f32 %v1379, %v1508
  %v1542 = vmul.f32 %v1383, %v1508
  %v1543 = vmul.f32 %v1387, %v1508
  %v1544 = vmul.f32 %v1391, %v1508
  %v1545 = vmul.f32 %v1395, %v1508
  %v1546 = vmul.f32 %v1399, %v1508
  %v1547 = vmul.f32 %v1403, %v1508
  %v1548 = vmul.f32 %v1407, %v1508
  %v1549 = vmul.f32 %v1411, %v1508
  %v1550 = vmul.f32 %v1415, %v1508
  %v1551 = vmul.f32 %v1419, %v1508
  %v1552 = vmul.f32 %v1423, %v1508
  %v1553 = vmul.f32 %v1427, %v1508
  %v1554 = vmul.f32 %v1431, %v1508
  %v1555 = vmul.f32 %v1435, %v1508
  %v1556 = vmul.f32 %v1439, %v1508
  %v1557 = vmul.f32 %v1443, %v1508
  %v1558 = vmul.f32 %v1447, %v1508
  %v1559 = vmul.f32 %v1451, %v1508
  %v1560 = vmul.f32 %v1455, %v1508
  %v1561 = vmul.f32 %v1459, %v1508
  %v1562 = vmul.f32 %v1463, %v1508
  %v1563 = vmul.f32 %v1467, %v1508
  %v1564 = vmul.f32 %v1471, %v1508
  %v1565 = vmul.f32 %v1475, %v1508
  %v1566 = vmul.f32 %v1479, %v1508
  %v1567 = vmul.f32 %v1483, %v1508
  %v1568 = vmul.f32 %v1487, %v1508
  %v1569 = vmul.f32 %v1491, %v1508
  %v1570 = vmul.f32 %v1495, %v1508
  %v1571 = vmul.f32 %v1499, %v1508
  %v1572 = vmul.f32 %v1503, %v1508
  %v1573 = vadd.f32 %v1185, %v1509
  %v1574 = vadd.f32 %v1186, %v1510
  %v1575 = vadd.f32 %v1187, %v1511
  %v1576 = vadd.f32 %v1188, %v1512
  %v1577 = vadd.f32 %v1189, %v1513
  %v1578 = vadd.f32 %v1190, %v1514
  %v1579 = vadd.f32 %v1191, %v1515
  %v1580 = vadd.f32 %v1192, %v1516
  %v1581 = vadd.f32 %v1193, %v1517
  %v1582 = vadd.f32 %v1194, %v1518
  %v1583 = vadd.f32 %v1195, %v1519
  %v1584 = vadd.f32 %v1196, %v1520
  %v1585 = vadd.f32 %v1197, %v1521
  %v1586 = vadd.f32 %v1198, %v1522
  %v1587 = vadd.f32 %v1199, %v1523
  %v1588 = vadd.f32 %v1200, %v1524
  %v1589 = vadd.f32 %v1201, %v1525
  %v1590 = vadd.f32 %v1202, %v1526
  %v1591 = vadd.f32 %v1203, %v1527
  %v1592 = vadd.f32 %v1204, %v1528
  %v1593 = vadd.f32 %v1205, %v1529
  %v1594 = vadd.f32 %v1206, %v1530
  %v1595 = vadd.f32 %v1207, %v1531
  %v1596 = vadd.f32 %v1208, %v1532
  %v1597 = vadd.f32 %v1209, %v1533
  %v1598 = vadd.f32 %v1210, %v1534
  %v1599 = vadd.f32 %v1211, %v1535
  %v1600 = vadd.f32 %v1212, %v1536
  %v1601 = vadd.f32 %v1213, %v1537
  %v1602 = vadd.f32 %v1214, %v1538
  %v1603 = vadd.f32 %v1215, %v1539
  %v1604 = vadd.f32 %v1216, %v1540
  %v1605 = vadd.f32 %v1217, %v1541
  %v1606 = vadd.f32 %v1218, %v1542
  %v1607 = vadd.f32 %v1219, %v1543
  %v1608 = vadd.f32 %v1220, %v1544
  %v1609 = vadd.f32 %v1221, %v1545
  %v1610 = vadd.f32 %v1222, %v1546
  %v1611 = vadd.f32 %v1223, %v1547
  %v1612 = vadd.f32 %v1224, %v1548
  %v1613 = vadd.f32 %v1225, %v1549
  %v1614 = vadd.f32 %v1226, %v1550
  %v1615 = vadd.f32 %v1227, %v1551
  %v1616 = vadd.f32 %v1228, %v1552
  %v1617 = vadd.f32 %v1229, %v1553
  %v1618 = vadd.f32 %v1230, %v1554
  %v1619 = vadd.f32 %v1231, %v1555
  %v1620 = vadd.f32 %v1232, %v1556
  %v1621 = vadd.f32 %v1233, %v1557
  %v1622 = vadd.f32 %v1234, %v1558
  %v1623 = vadd.f32 %v1235, %v1559
  %v1624 = vadd.f32 %v1236, %v1560
  %v1625 = vadd.f32 %v1237, %v1561
  %v1626 = vadd.f32 %v1238, %v1562
  %v1627 = vadd.f32 %v1239, %v1563
  %v1628 = vadd.f32 %v1240, %v1564
  %v1629 = vadd.f32 %v1241, %v1565
  %v1630 = vadd.f32 %v1242, %v1566
  %v1631 = vadd.f32 %v1243, %v1567
  %v1632 = vadd.f32 %v1244, %v1568
  %v1633 = vadd.f32 %v1245, %v1569
  %v1634 = vadd.f32 %v1246, %v1570
  %v1635 = vadd.f32 %v1247, %v1571
  %v1636 = vadd.f32 %v1248, %v1572
  %v1637 = vmax.f32 %v1573, 0.0
  %v1638 = vmax.f32 %v1574, 0.0
  %v1639 = vmax.f32 %v1575, 0.0
  %v1640 = vmax.f32 %v1576, 0.0
  %v1641 = vmax.f32 %v1577, 0.0
  %v1642 = vmax.f32 %v1578, 0.0
  %v1643 = vmax.f32 %v1579, 0.0
  %v1644 = vmax.f32 %v1580, 0.0
  %v1645 = vmax.f32 %v1581, 0.0
  %v1646 = vmax.f32 %v1582, 0.0
  %v1647 = vmax.f32 %v1583, 0.0
  %v1648 = vmax.f32 %v1584, 0.0
  %v1649 = vmax.f32 %v1585, 0.0
  %v1650 = vmax.f32 %v1586, 0.0
  %v1651 = vmax.f32 %v1587, 0.0
  %v1652 = vmax.f32 %v1588, 0.0
  %v1653 = vmax.f32 %v1589, 0.0
  %v1654 = vmax.f32 %v1590, 0.0
  %v1655 = vmax.f32 %v1591, 0.0
  %v1656 = vmax.f32 %v1592, 0.0
  %v1657 = vmax.f32 %v1593, 0.0
  %v1658 = vmax.f32 %v1594, 0.0
  %v1659 = vmax.f32 %v1595, 0.0
  %v1660 = vmax.f32 %v1596, 0.0
  %v1661 = vmax.f32 %v1597, 0.0
  %v1662 = vmax.f32 %v1598, 0.0
  %v1663 = vmax.f32 %v1599, 0.0
  %v1664 = vmax.f32 %v1600, 0.0
  %v1665 = vmax.f32 %v1601, 0.0
  %v1666 = vmax.f32 %v1602, 0.0
  %v1667 = vmax.f32 %v1603, 0.0
  %v1668 = vmax.f32 %v1604, 0.0
  %v1669 = vmax.f32 %v1605, 0.0
  %v1670 = vmax.f32 %v1606, 0.0
  %v1671 = vmax.f32 %v1607, 0.0
  %v1672 = vmax.f32 %v1608, 0.0
  %v1673 = vmax.f32 %v1609, 0.0
  %v1674 = vmax.f32 %v1610, 0.0
  %v1675 = vmax.f32 %v1611, 0.0
  %v1676 = vmax.f32 %v1612, 0.0
  %v1677 = vmax.f32 %v1613, 0.0
  %v1678 = vmax.f32 %v1614, 0.0
  %v1679 = vmax.f32 %v1615, 0.0
  %v1680 = vmax.f32 %v1616, 0.0
  %v1681 = vmax.f32 %v1617, 0.0
  %v1682 = vmax.f32 %v1618, 0.0
  %v1683 = vmax.f32 %v1619, 0.0
  %v1684 = vmax.f32 %v1620, 0.0
  %v1685 = vmax.f32 %v1621, 0.0
  %v1686 = vmax.f32 %v1622, 0.0
  %v1687 = vmax.f32 %v1623, 0.0
  %v1688 = vmax.f32 %v1624, 0.0
  %v1689 = vmax.f32 %v1625, 0.0
  %v1690 = vmax.f32 %v1626, 0.0
  %v1691 = vmax.f32 %v1627, 0.0
  %v1692 = vmax.f32 %v1628, 0.0
  %v1693 = vmax.f32 %v1629, 0.0
  %v1694 = vmax.f32 %v1630, 0.0
  %v1695 = vmax.f32 %v1631, 0.0
  %v1696 = vmax.f32 %v1632, 0.0
  %v1697 = vmax.f32 %v1633, 0.0
  %v1698 = vmax.f32 %v1634, 0.0
  %v1699 = vmax.f32 %v1635, 0.0
  %v1700 = vmax.f32 %v1636, 0.0
  %v1701 = vld [vmem:[%s4 + $0x8] sm:$0xff]
  %v1702 = vld [vmem:[%s4 + $0x10] sm:$0xff]
  %v1703 = vld [vmem:[%s4 + $0x18] sm:$0xff]
  %v1704 = vld [vmem:[%s4 + $0x20] sm:$0xff]
  %v1705 = vld [vmem:[%s4 + $0x28] sm:$0xff]
  %v1706 = vld [vmem:[%s4 + $0x30] sm:$0xff]
  %v1707 = vld [vmem:[%s4 + $0x38] sm:$0xff]
  %v1708 = vld [vmem:[%s4 + $0x40] sm:$0xff]
  %v1709 = vld [vmem:[%s4 + $0x48] sm:$0xff]
  %v1710 = vld [vmem:[%s4 + $0x50] sm:$0xff]
  %v1711 = vld [vmem:[%s4 + $0x58] sm:$0xff]
  %v1712 = vld [vmem:[%s4 + $0x60] sm:$0xff]
  %v1713 = vld [vmem:[%s4 + $0x68] sm:$0xff]
  %v1714 = vld [vmem:[%s4 + $0x70] sm:$0xff]
  %v1715 = vld [vmem:[%s4 + $0x78] sm:$0xff]
  %v1716 = vld [vmem:[%s4 + $0x80] sm:$0xff]
  %v1717 = vld [vmem:[%s1] sm:$0xff]
  %v1718 = vld [vmem:[%s1 + $0x8] sm:$0xff]
  %1719 = vmatprep.subr.mxu0 0.0
  %1720 = vmatpush1.msra.mxu0 %v1716
  %1721 = vmatprep.subr.mxu0 0.0
  %1722 = vmatpush1.msra.mxu0 %v1715
  %1723 = vmatprep.subr.mxu0 0.0
  %1724 = vmatpush1.msra.mxu0 %v1714
  %1725 = vmatprep.subr.mxu0 0.0
  %1726 = vmatpush1.msra.mxu0 %v1713
  %1727 = vmatprep.subr.mxu0 0.0
  %1728 = vmatpush1.msra.mxu0 %v1712
  %1729 = vmatprep.subr.mxu0 0.0
  %1730 = vmatpush1.msra.mxu0 %v1711
  %1731 = vmatprep.subr.mxu0 0.0
  %1732 = vmatpush1.msra.mxu0 %v1710
  %1733 = vmatprep.subr.mxu0 0.0
  %1734 = vmatpush1.msra.mxu0 %v1709
  %1735 = vmatprep.subr.mxu0 0.0
  %1736 = vmatpush1.msra.mxu0 %v1708
  %1737 = vmatprep.subr.mxu0 0.0
  %1738 = vmatpush1.msra.mxu0 %v1707
  %1739 = vmatprep.subr.mxu0 0.0
  %1740 = vmatpush1.msra.mxu0 %v1706
  %1741 = vmatprep.subr.mxu0 0.0
  %1742 = vmatpush1.msra.mxu0 %v1705
  %1743 = vmatprep.subr.mxu0 0.0
  %1744 = vmatpush1.msra.mxu0 %v1704
  %1745 = vmatprep.subr.mxu0 0.0
  %1746 = vmatpush1.msra.mxu0 %v1703
  %1747 = vmatprep.subr.mxu0 0.0
  %1748 = vmatpush1.msra.mxu0 %v1702
  %1749 = vmatprep.subr.mxu0 0.0
  %1750 = vmatpush1.msra.mxu0 %v1701
  %1751 = vmatprep.subr.mxu0 0.0
  %1752 = vmatpush2.msra.mxu0 0.0
  %1753 = vmatprep.subr.mxu0 0.0
  %1754 = vmatpush2.msra.mxu0 0.0
  %1755 = vmatprep.subr.mxu0 0.0
  %1756 = vmatpush2.msra.mxu0 0.0
  %1757 = vmatprep.subr.mxu0 0.0
  %1758 = vmatpush2.msra.mxu0 0.0
  %1759 = vmatprep.subr.mxu0 0.0
  %1760 = vmatpush2.msra.mxu0 0.0
  %1761 = vmatprep.subr.mxu0 0.0
  %1762 = vmatpush2.msra.mxu0 0.0
  %1763 = vmatprep.subr.mxu0 0.0
  %1764 = vmatpush2.msra.mxu0 0.0
  %1765 = vmatprep.subr.mxu0 0.0
  %1766 = vmatpush2.msra.mxu0 0.0
  %1767 = vmatprep.subr.mxu0 0.0
  %1768 = vmatpush2.msra.mxu0 0.0
  %1769 = vmatprep.subr.mxu0 0.0
  %1770 = vmatpush2.msra.mxu0 0.0
  %1771 = vmatprep.subr.mxu0 0.0
  %1772 = vmatpush2.msra.mxu0 0.0
  %1773 = vmatprep.subr.mxu0 0.0
  %1774 = vmatpush2.msra.mxu0 0.0
  %1775 = vmatprep.subr.mxu0 0.0
  %1776 = vmatpush2.msra.mxu0 0.0
  %1777 = vmatprep.subr.mxu0 0.0
  %1778 = vmatpush2.msra.mxu0 0.0
  %1779 = vmatprep.subr.mxu0 0.0
  %1780 = vmatpush2.msra.mxu0 0.0
  %1781 = vmatprep.subr.mxu0 0.0
  %1782 = vmatpush2.msra.mxu0 0.0
  %1783 = vmatprep.mubr.f32.mxu0 0.0
  %1784 = vmatmul.mubr.f32.gmra.mxu0 %v1717
  %v1785 = vpop.f32.mrf.mxu0
  %v1786 = vadd.f32 0.0, %v1785
  %v1787 = vpop.f32.mrf.mxu0
  %1788 = vmatprep.mubr.f32.mxu0 0.0
  %1789 = vmatmul.mubr.f32.gmra.mxu0 %v1718
  %v1790 = vpop.f32.mrf.mxu0
  %v1791 = vadd.f32 0.0, %v1790
  %v1792 = vpop.f32.mrf.mxu0
  %1793 = vdwg.mxu0
  %v1794 = vmax.f32 %v1786, 0.0
  %v1795 = vmax.f32 %v1791, 0.0
  %v1796 = vld [vmem:[%s2] sm:$0xff]
  %v1798 = vcombine.high %v1796, %v1796
  %v1800 = vunpack.c.l.s4 1983009808
  %v1801 = vunpack.c.0.s8 %v1800
  %v1802 = vlaneseq
  %v1803 = vshrl.u32 %v1802, 7
  %v1804 = vsub.s32 %v1801, %v1803
  %v1805 = vrot.slane %v1796, %v1804
  %v1807 = vunpack.c.l.s4 1983009808
  %v1808 = vunpack.c.0.s8 %v1807
  %v1809 = vlaneseq
  %v1810 = vshrl.u32 %v1809, 7
  %v1811 = vsub.s32 %v1808, %v1810
  %v1812 = vrot.slane %v1798, %v1811
  %v1813 = vcombine.high %v1805, %v1805
  %v1814 = vcombine.high %v1812, %v1812
  %1819 = vmatprep.subr.mxu0 0.0
  %1820 = vmatpush1.msra.mxu0 %v1652
  %1821 = vmatprep.subr.mxu0 0.0
  %1822 = vmatpush1.msra.mxu0 %v1651
  %1823 = vmatprep.subr.mxu0 0.0
  %1824 = vmatpush1.msra.mxu0 %v1650
  %1825 = vmatprep.subr.mxu0 0.0
  %1826 = vmatpush1.msra.mxu0 %v1649
  %1827 = vmatprep.subr.mxu0 0.0
  %1828 = vmatpush1.msra.mxu0 %v1648
  %1829 = vmatprep.subr.mxu0 0.0
  %1830 = vmatpush1.msra.mxu0 %v1647
  %1831 = vmatprep.subr.mxu0 0.0
  %1832 = vmatpush1.msra.mxu0 %v1646
  %1833 = vmatprep.subr.mxu0 0.0
  %1834 = vmatpush1.msra.mxu0 %v1645
  %1835 = vmatprep.subr.mxu0 0.0
  %1836 = vmatpush1.msra.mxu0 %v1644
  %1837 = vmatprep.subr.mxu0 0.0
  %1838 = vmatpush1.msra.mxu0 %v1643
  %1839 = vmatprep.subr.mxu0 0.0
  %1840 = vmatpush1.msra.mxu0 %v1642
  %1841 = vmatprep.subr.mxu0 0.0
  %1842 = vmatpush1.msra.mxu0 %v1641
  %1843 = vmatprep.subr.mxu0 0.0
  %1844 = vmatpush1.msra.mxu0 %v1640
  %1845 = vmatprep.subr.mxu0 0.0
  %1846 = vmatpush1.msra.mxu0 %v1639
  %1847 = vmatprep.subr.mxu0 0.0
  %1848 = vmatpush1.msra.mxu0 %v1638
  %1849 = vmatprep.subr.mxu0 0.0
  %1850 = vmatpush1.msra.mxu0 %v1637
  %1851 = vmatprep.subr.mxu0 0.0
  %1852 = vmatpush2.msra.mxu0 %v1668
  %1853 = vmatprep.subr.mxu0 0.0
  %1854 = vmatpush2.msra.mxu0 %v1667
  %1855 = vmatprep.subr.mxu0 0.0
  %1856 = vmatpush2.msra.mxu0 %v1666
  %1857 = vmatprep.subr.mxu0 0.0
  %1858 = vmatpush2.msra.mxu0 %v1665
  %1859 = vmatprep.subr.mxu0 0.0
  %1860 = vmatpush2.msra.mxu0 %v1664
  %1861 = vmatprep.subr.mxu0 0.0
  %1862 = vmatpush2.msra.mxu0 %v1663
  %1863 = vmatprep.subr.mxu0 0.0
  %1864 = vmatpush2.msra.mxu0 %v1662
  %1865 = vmatprep.subr.mxu0 0.0
  %1866 = vmatpush2.msra.mxu0 %v1661
  %1867 = vmatprep.subr.mxu0 0.0
  %1868 = vmatpush2.msra.mxu0 %v1660
  %1869 = vmatprep.subr.mxu0 0.0
  %1870 = vmatpush2.msra.mxu0 %v1659
  %1871 = vmatprep.subr.mxu0 0.0
  %1872 = vmatpush2.msra.mxu0 %v1658
  %1873 = vmatprep.subr.mxu0 0.0
  %1874 = vmatpush2.msra.mxu0 %v1657
  %1875 = vmatprep.subr.mxu0 0.0
  %1876 = vmatpush2.msra.mxu0 %v1656
  %1877 = vmatprep.subr.mxu0 0.0
  %1878 = vmatpush2.msra.mxu0 %v1655
  %1879 = vmatprep.subr.mxu0 0.0
  %1880 = vmatpush2.msra.mxu0 %v1654
  %1881 = vmatprep.subr.mxu0 0.0
  %1882 = vmatpush2.msra.mxu0 %v1653
  %1883 = vmatprep.mubr.f32.mxu0 %v1813
  %1884 = vmatmul.mubr.f32.gmra.mxu0 %v1805
  %v1885 = vpop.f32.mrf.mxu0
  %v1886 = vadd.f32 0.0, %v1885
  %v1887 = vpop.f32.mrf.mxu0
  %1888 = vdwg.mxu0
  %1889 = vmatprep.subr.mxu0 0.0
  %1890 = vmatpush1.msra.mxu0 %v1684
  %1891 = vmatprep.subr.mxu0 0.0
  %1892 = vmatpush1.msra.mxu0 %v1683
  %1893 = vmatprep.subr.mxu0 0.0
  %1894 = vmatpush1.msra.mxu0 %v1682
  %1895 = vmatprep.subr.mxu0 0.0
  %1896 = vmatpush1.msra.mxu0 %v1681
  %1897 = vmatprep.subr.mxu0 0.0
  %1898 = vmatpush1.msra.mxu0 %v1680
  %1899 = vmatprep.subr.mxu0 0.0
  %1900 = vmatpush1.msra.mxu0 %v1679
  %1901 = vmatprep.subr.mxu0 0.0
  %1902 = vmatpush1.msra.mxu0 %v1678
  %1903 = vmatprep.subr.mxu0 0.0
  %1904 = vmatpush1.msra.mxu0 %v1677
  %1905 = vmatprep.subr.mxu0 0.0
  %1906 = vmatpush1.msra.mxu0 %v1676
  %1907 = vmatprep.subr.mxu0 0.0
  %1908 = vmatpush1.msra.mxu0 %v1675
  %1909 = vmatprep.subr.mxu0 0.0
  %1910 = vmatpush1.msra.mxu0 %v1674
  %1911 = vmatprep.subr.mxu0 0.0
  %1912 = vmatpush1.msra.mxu0 %v1673
  %1913 = vmatprep.subr.mxu0 0.0
  %1914 = vmatpush1.msra.mxu0 %v1672
  %1915 = vmatprep.subr.mxu0 0.0
  %1916 = vmatpush1.msra.mxu0 %v1671
  %1917 = vmatprep.subr.mxu0 0.0
  %1918 = vmatpush1.msra.mxu0 %v1670
  %1919 = vmatprep.subr.mxu0 0.0
  %1920 = vmatpush1.msra.mxu0 %v1669
  %1921 = vmatprep.subr.mxu0 0.0
  %1922 = vmatpush2.msra.mxu0 %v1700
  %1923 = vmatprep.subr.mxu0 0.0
  %1924 = vmatpush2.msra.mxu0 %v1699
  %1925 = vmatprep.subr.mxu0 0.0
  %1926 = vmatpush2.msra.mxu0 %v1698
  %1927 = vmatprep.subr.mxu0 0.0
  %1928 = vmatpush2.msra.mxu0 %v1697
  %1929 = vmatprep.subr.mxu0 0.0
  %1930 = vmatpush2.msra.mxu0 %v1696
  %1931 = vmatprep.subr.mxu0 0.0
  %1932 = vmatpush2.msra.mxu0 %v1695
  %1933 = vmatprep.subr.mxu0 0.0
  %1934 = vmatpush2.msra.mxu0 %v1694
  %1935 = vmatprep.subr.mxu0 0.0
  %1936 = vmatpush2.msra.mxu0 %v1693
  %1937 = vmatprep.subr.mxu0 0.0
  %1938 = vmatpush2.msra.mxu0 %v1692
  %1939 = vmatprep.subr.mxu0 0.0
  %1940 = vmatpush2.msra.mxu0 %v1691
  %1941 = vmatprep.subr.mxu0 0.0
  %1942 = vmatpush2.msra.mxu0 %v1690
  %1943 = vmatprep.subr.mxu0 0.0
  %1944 = vmatpush2.msra.mxu0 %v1689
  %1945 = vmatprep.subr.mxu0 0.0
  %1946 = vmatpush2.msra.mxu0 %v1688
  %1947 = vmatprep.subr.mxu0 0.0
  %1948 = vmatpush2.msra.mxu0 %v1687
  %1949 = vmatprep.subr.mxu0 0.0
  %1950 = vmatpush2.msra.mxu0 %v1686
  %1951 = vmatprep.subr.mxu0 0.0
  %1952 = vmatpush2.msra.mxu0 %v1685
  %1953 = vmatprep.mubr.f32.mxu0 %v1814
  %1954 = vmatmul.mubr.f32.gmra.mxu0 %v1812
  %v1955 = vpop.f32.mrf.mxu0
  %v1956 = vadd.f32 %v1886, %v1955
  %v1957 = vpop.f32.mrf.mxu0
  %1958 = vdwg.mxu0
  %v1959 = vld [vmem:[%s3] sm:$0x3]
  %vm1960 = vcmask 130048
  %v1962 = vsel %vm1960, %v1959, 0
  %1964 = vmatprep.subr.mxu0 0.0
  %1965 = vmatpush1.msra.mxu0 0.0
  %1966 = vmatprep.subr.mxu0 0.0
  %1967 = vmatpush1.msra.mxu0 0.0
  %1968 = vmatprep.subr.mxu0 0.0
  %1969 = vmatpush1.msra.mxu0 0.0
  %1970 = vmatprep.subr.mxu0 0.0
  %1971 = vmatpush1.msra.mxu0 0.0
  %1972 = vmatprep.subr.mxu0 0.0
  %1973 = vmatpush1.msra.mxu0 0.0
  %1974 = vmatprep.subr.mxu0 0.0
  %1975 = vmatpush1.msra.mxu0 0.0
  %1976 = vmatprep.subr.mxu0 0.0
  %1977 = vmatpush1.msra.mxu0 0.0
  %1978 = vmatprep.subr.mxu0 0.0
  %1979 = vmatpush1.msra.mxu0 0.0
  %1980 = vmatprep.subr.mxu0 0.0
  %1981 = vmatpush1.msra.mxu0 0.0
  %1982 = vmatprep.subr.mxu0 0.0
  %1983 = vmatpush1.msra.mxu0 0.0
  %1984 = vmatprep.subr.mxu0 0.0
  %1985 = vmatpush1.msra.mxu0 0.0
  %1986 = vmatprep.subr.mxu0 0.0
  %1987 = vmatpush1.msra.mxu0 0.0
  %1988 = vmatprep.subr.mxu0 0.0
  %1989 = vmatpush1.msra.mxu0 0.0
  %1990 = vmatprep.subr.mxu0 0.0
  %1991 = vmatpush1.msra.mxu0 0.0
  %1992 = vmatprep.subr.mxu0 0.0
  %1993 = vmatpush1.msra.mxu0 %v1795
  %1994 = vmatprep.subr.mxu0 0.0
  %1995 = vmatpush1.msra.mxu0 %v1794
  %1996 = vmatprep.subr.mxu0 0.0
  %1997 = vmatpush2.msra.mxu0 0.0
  %1998 = vmatprep.subr.mxu0 0.0
  %1999 = vmatpush2.msra.mxu0 0.0
  %2000 = vmatprep.subr.mxu0 0.0
  %2001 = vmatpush2.msra.mxu0 0.0
  %2002 = vmatprep.subr.mxu0 0.0
  %2003 = vmatpush2.msra.mxu0 0.0
  %2004 = vmatprep.subr.mxu0 0.0
  %2005 = vmatpush2.msra.mxu0 0.0
  %2006 = vmatprep.subr.mxu0 0.0
  %2007 = vmatpush2.msra.mxu0 0.0
  %2008 = vmatprep.subr.mxu0 0.0
  %2009 = vmatpush2.msra.mxu0 0.0
  %2010 = vmatprep.subr.mxu0 0.0
  %2011 = vmatpush2.msra.mxu0 0.0
  %2012 = vmatprep.subr.mxu0 0.0
  %2013 = vmatpush2.msra.mxu0 0.0
  %2014 = vmatprep.subr.mxu0 0.0
  %2015 = vmatpush2.msra.mxu0 0.0
  %2016 = vmatprep.subr.mxu0 0.0
  %2017 = vmatpush2.msra.mxu0 0.0
  %2018 = vmatprep.subr.mxu0 0.0
  %2019 = vmatpush2.msra.mxu0 0.0
  %2020 = vmatprep.subr.mxu0 0.0
  %2021 = vmatpush2.msra.mxu0 0.0
  %2022 = vmatprep.subr.mxu0 0.0
  %2023 = vmatpush2.msra.mxu0 0.0
  %2024 = vmatprep.subr.mxu0 0.0
  %2025 = vmatpush2.msra.mxu0 0.0
  %2026 = vmatprep.subr.mxu0 0.0
  %2027 = vmatpush2.msra.mxu0 0.0
  %2028 = vmatprep.mubr.f32.mxu0 0.0
  %2029 = vmatmul.mubr.f32.gmra.mxu0 %v1962
  %v2030 = vpop.f32.mrf.mxu0
  %v2031 = vadd.f32 0.0, %v2030
  %v2032 = vpop.f32.mrf.mxu0
  %2033 = vdwg.mxu0
  %2035 = vrot.lane.b32.xlu0 %v2031, 32
  %v2036 = vpop.permute.xlu0 %2035
  %vm2038 = vcmask 261120
  %v2039 = vsel %vm2038, %v1956, %v2036
  %v2040 = vld [vmem:[%s4 + $0x88] sm:$0xff]
  %v2041 = vld [vmem:[%s4 + $0x90] sm:$0xff]
  %v2042 = vld [vmem:[%s4 + $0x98] sm:$0xff]
  %v2043 = vld [vmem:[%s4 + $0xa0] sm:$0xff]
  %v2044 = vld [vmem:[%s4 + $0xa8] sm:$0xff]
  %v2045 = vld [vmem:[%s4 + $0xb0] sm:$0xff]
  %v2046 = vld [vmem:[%s4 + $0xb8] sm:$0xff]
  %v2047 = vld [vmem:[%s4 + $0xc0] sm:$0xff]
  %vm2048 = vcmask 523264
  %v2050 = vsel %vm2048, %v2039, 0
  %2052 = vmatprep.subr.mxu0 0.0
  %2053 = vmatpush1.msra.mxu0 0.0
  %2054 = vmatprep.subr.mxu0 0.0
  %2055 = vmatpush1.msra.mxu0 0.0
  %2056 = vmatprep.subr.mxu0 0.0
  %2057 = vmatpush1.msra.mxu0 0.0
  %2058 = vmatprep.subr.mxu0 0.0
  %2059 = vmatpush1.msra.mxu0 0.0
  %2060 = vmatprep.subr.mxu0 0.0
  %2061 = vmatpush1.msra.mxu0 0.0
  %2062 = vmatprep.subr.mxu0 0.0
  %2063 = vmatpush1.msra.mxu0 0.0
  %2064 = vmatprep.subr.mxu0 0.0
  %2065 = vmatpush1.msra.mxu0 0.0
  %2066 = vmatprep.subr.mxu0 0.0
  %2067 = vmatpush1.msra.mxu0 0.0
  %2068 = vmatprep.subr.mxu0 0.0
  %2069 = vmatpush1.msra.mxu0 %v2047
  %2070 = vmatprep.subr.mxu0 0.0
  %2071 = vmatpush1.msra.mxu0 %v2046
  %2072 = vmatprep.subr.mxu0 0.0
  %2073 = vmatpush1.msra.mxu0 %v2045
  %2074 = vmatprep.subr.mxu0 0.0
  %2075 = vmatpush1.msra.mxu0 %v2044
  %2076 = vmatprep.subr.mxu0 0.0
  %2077 = vmatpush1.msra.mxu0 %v2043
  %2078 = vmatprep.subr.mxu0 0.0
  %2079 = vmatpush1.msra.mxu0 %v2042
  %2080 = vmatprep.subr.mxu0 0.0
  %2081 = vmatpush1.msra.mxu0 %v2041
  %2082 = vmatprep.subr.mxu0 0.0
  %2083 = vmatpush1.msra.mxu0 %v2040
  %2084 = vmatprep.subr.mxu0 0.0
  %2085 = vmatpush2.msra.mxu0 0.0
  %2086 = vmatprep.subr.mxu0 0.0
  %2087 = vmatpush2.msra.mxu0 0.0
  %2088 = vmatprep.subr.mxu0 0.0
  %2089 = vmatpush2.msra.mxu0 0.0
  %2090 = vmatprep.subr.mxu0 0.0
  %2091 = vmatpush2.msra.mxu0 0.0
  %2092 = vmatprep.subr.mxu0 0.0
  %2093 = vmatpush2.msra.mxu0 0.0
  %2094 = vmatprep.subr.mxu0 0.0
  %2095 = vmatpush2.msra.mxu0 0.0
  %2096 = vmatprep.subr.mxu0 0.0
  %2097 = vmatpush2.msra.mxu0 0.0
  %2098 = vmatprep.subr.mxu0 0.0
  %2099 = vmatpush2.msra.mxu0 0.0
  %2100 = vmatprep.subr.mxu0 0.0
  %2101 = vmatpush2.msra.mxu0 0.0
  %2102 = vmatprep.subr.mxu0 0.0
  %2103 = vmatpush2.msra.mxu0 0.0
  %2104 = vmatprep.subr.mxu0 0.0
  %2105 = vmatpush2.msra.mxu0 0.0
  %2106 = vmatprep.subr.mxu0 0.0
  %2107 = vmatpush2.msra.mxu0 0.0
  %2108 = vmatprep.subr.mxu0 0.0
  %2109 = vmatpush2.msra.mxu0 0.0
  %2110 = vmatprep.subr.mxu0 0.0
  %2111 = vmatpush2.msra.mxu0 0.0
  %2112 = vmatprep.subr.mxu0 0.0
  %2113 = vmatpush2.msra.mxu0 0.0
  %2114 = vmatprep.subr.mxu0 0.0
  %2115 = vmatpush2.msra.mxu0 0.0
  %2116 = vmatprep.mubr.f32.mxu0 0.0
  %2117 = vmatmul.mubr.f32.gmra.mxu0 %v2050
  %v2118 = vpop.f32.mrf.mxu0
  %v2119 = vadd.f32 0.0, %v2118
  %v2120 = vpop.f32.mrf.mxu0
  %2121 = vdwg.mxu0
  %v2122 = vtanh.pop %v2119
  %v2123 = vld [vmem:[%s4 + $0xc8] sm:$0xff]
  %v2124 = vld [vmem:[%s4 + $0xd0] sm:$0xff]
  %v2125 = vld [vmem:[%s4 + $0xd8] sm:$0xff]
  %v2126 = vld [vmem:[%s4 + $0xe0] sm:$0xff]
  %v2127 = vld [vmem:[%s4 + $0xe8] sm:$0xff]
  %v2128 = vld [vmem:[%s4 + $0xf0] sm:$0xff]
  %v2129 = vld [vmem:[%s4 + $0xf8] sm:$0xff]
  %v2130 = vld [vmem:[%s4 + $0x100] sm:$0xff]
  %v2132 = vsel %vm2048, %v2122, 0
  %2134 = vmatprep.subr.mxu0 0.0
  %2135 = vmatpush1.msra.mxu0 0.0
  %2136 = vmatprep.subr.mxu0 0.0
  %2137 = vmatpush1.msra.mxu0 0.0
  %2138 = vmatprep.subr.mxu0 0.0
  %2139 = vmatpush1.msra.mxu0 0.0
  %2140 = vmatprep.subr.mxu0 0.0
  %2141 = vmatpush1.msra.mxu0 0.0
  %2142 = vmatprep.subr.mxu0 0.0
  %2143 = vmatpush1.msra.mxu0 0.0
  %2144 = vmatprep.subr.mxu0 0.0
  %2145 = vmatpush1.msra.mxu0 0.0
  %2146 = vmatprep.subr.mxu0 0.0
  %2147 = vmatpush1.msra.mxu0 0.0
  %2148 = vmatprep.subr.mxu0 0.0
  %2149 = vmatpush1.msra.mxu0 0.0
  %2150 = vmatprep.subr.mxu0 0.0
  %2151 = vmatpush1.msra.mxu0 %v2130
  %2152 = vmatprep.subr.mxu0 0.0
  %2153 = vmatpush1.msra.mxu0 %v2129
  %2154 = vmatprep.subr.mxu0 0.0
  %2155 = vmatpush1.msra.mxu0 %v2128
  %2156 = vmatprep.subr.mxu0 0.0
  %2157 = vmatpush1.msra.mxu0 %v2127
  %2158 = vmatprep.subr.mxu0 0.0
  %2159 = vmatpush1.msra.mxu0 %v2126
  %2160 = vmatprep.subr.mxu0 0.0
  %2161 = vmatpush1.msra.mxu0 %v2125
  %2162 = vmatprep.subr.mxu0 0.0
  %2163 = vmatpush1.msra.mxu0 %v2124
  %2164 = vmatprep.subr.mxu0 0.0
  %2165 = vmatpush1.msra.mxu0 %v2123
  %2166 = vmatprep.subr.mxu0 0.0
  %2167 = vmatpush2.msra.mxu0 0.0
  %2168 = vmatprep.subr.mxu0 0.0
  %2169 = vmatpush2.msra.mxu0 0.0
  %2170 = vmatprep.subr.mxu0 0.0
  %2171 = vmatpush2.msra.mxu0 0.0
  %2172 = vmatprep.subr.mxu0 0.0
  %2173 = vmatpush2.msra.mxu0 0.0
  %2174 = vmatprep.subr.mxu0 0.0
  %2175 = vmatpush2.msra.mxu0 0.0
  %2176 = vmatprep.subr.mxu0 0.0
  %2177 = vmatpush2.msra.mxu0 0.0
  %2178 = vmatprep.subr.mxu0 0.0
  %2179 = vmatpush2.msra.mxu0 0.0
  %2180 = vmatprep.subr.mxu0 0.0
  %2181 = vmatpush2.msra.mxu0 0.0
  %2182 = vmatprep.subr.mxu0 0.0
  %2183 = vmatpush2.msra.mxu0 0.0
  %2184 = vmatprep.subr.mxu0 0.0
  %2185 = vmatpush2.msra.mxu0 0.0
  %2186 = vmatprep.subr.mxu0 0.0
  %2187 = vmatpush2.msra.mxu0 0.0
  %2188 = vmatprep.subr.mxu0 0.0
  %2189 = vmatpush2.msra.mxu0 0.0
  %2190 = vmatprep.subr.mxu0 0.0
  %2191 = vmatpush2.msra.mxu0 0.0
  %2192 = vmatprep.subr.mxu0 0.0
  %2193 = vmatpush2.msra.mxu0 0.0
  %2194 = vmatprep.subr.mxu0 0.0
  %2195 = vmatpush2.msra.mxu0 0.0
  %2196 = vmatprep.subr.mxu0 0.0
  %2197 = vmatpush2.msra.mxu0 0.0
  %2198 = vmatprep.mubr.f32.mxu0 0.0
  %2199 = vmatmul.mubr.f32.gmra.mxu0 %v2132
  %v2200 = vpop.f32.mrf.mxu0
  %v2201 = vadd.f32 0.0, %v2200
  %v2202 = vpop.f32.mrf.mxu0
  %2203 = vdwg.mxu0
  %2204 = vrot.lane.b32.xlu0 %v2122, 96
  %v2205 = vpop.permute.xlu0 %2204
  %v2207 = vadd.f32 %v2122, %v2205
  %v2208 = vmul.f32 %v2207, 50.0
  %vm2209 = vcmask 25600
  %v2210 = vsel %vm2209, %v2201, -inf
  %2211 = vmax.xlane.f32.xlu0 %v2210
  %v2212 = vpop.xlane.xlu0 %2211
  %v2213 = vsub.f32 %v2201, %v2212
  %v2214 = vmul.f32 %v2213, 1.442695
  %v2215 = vpow.pop %v2214
  %v2216 = vsel %vm2209, %v2215, 0.0
  %2217 = vadd.xlane.f32.xlu0 %v2216
  %v2218 = vpop.xlane.xlu0 %2217
  %v2219 = vrcp.pop %v2218
  %v2220 = vmul.f32 %v2215, %v2219
  %vm2221 = vcmask 58400
  %v2222 = vsel %vm2221, %v2201, -inf
  %2223 = vmax.xlane.f32.xlu0 %v2222
  %v2224 = vpop.xlane.xlu0 %2223
  %v2225 = vsub.f32 %v2201, %v2224
  %v2226 = vmul.f32 %v2225, 1.442695
  %v2227 = vpow.pop %v2226
  %2229 = vrot.lane.b32.xlu0 %v2227, 124
  %v2230 = vpop.permute.xlu0 %2229
  %v2232 = vsel %vm2209, %v2230, 0.0
  %2233 = vadd.xlane.f32.xlu0 %v2232
  %v2234 = vpop.xlane.xlu0 %2233
  %v2235 = vrcp.pop %v2234
  %v2236 = vmul.f32 %v2227, %v2235
  %2238 = vrot.lane.b32.xlu0 %v2236, 124
  %v2239 = vpop.permute.xlu0 %2238
  %v2241 = vadd.f32 %v2220, %v2239
  %v2242 = vmul.f32 %v2241, 0.5
  %2244 = vrot.lane.b32.xlu0 %v2242, 32
  %v2245 = vpop.permute.xlu0 %2244
  %v2247 = vsel %vm2038, %v2208, %v2245
  %vm2248 = vcmask 293888
  %v2249 = vsel %vm2248, %v2247, 0.0
  %2250 = vst [vmem:[%s5] sm:$0x3] %v2249
  // Predicated region
  $region22: #{emvcc_forward.1} parent=0 // pred_check
    _
  $region23: #{emvcc_forward.1} parent=0 // pred_check_branch
    %2252 = sbr.rel (0) target = $region25
  $region24: #{emvcc_forward.1} parent=0 // pred_region
    _
  $region25: #{emvcc_forward.1} parent=0 // pred_fallthru
    _
  // Predicated region
  $region26: #{emvcc_forward.1} parent=0 // pred_check
    _
  $region27: #{emvcc_forward.1} parent=0 // pred_check_branch
    %2254 = sbr.rel (0) target = $region29
  $region28: #{emvcc_forward.1} parent=0 // pred_region
    _
  $region29: #{emvcc_forward.1} parent=0 // pred_fallthru
    _

</llo_original>
